<compile_context>
chip_gen: v7x
topology: tpu7x:2x2x1
jax: 0.10.0
libtpu: 0.0.40
codegen_flags: <defaults>
</compile_context>

<pallas_src>
import jax
import jax.numpy as jnp
from jax import lax
from jax.experimental import pallas as pl
from jax.experimental.pallas import tpu as pltpu


def _decoder_kernel(tf_ref,     # SMEM (T,)       int32 teacher-forcing flags
                    capg_ref,   # VMEM (T, B, 4H) caption gates (incl. rec + biases)
                    rec_ref,    # VMEM (B, 4H)    features @ W_hh^T + (b_ih + b_hh)
                    m_ref,      # VMEM (V, 4H)    emb @ W_ih^T   (greedy path only)
                    w12_ref,    # VMEM (H, V)     fused head weight  W1^T @ W2^T
                    b12_ref,    # VMEM (1, V)     fused head bias    b1 @ W2^T + b2
                    out_ref):   # VMEM (T, B, V)  logits (time-major)
    T, B, G = capg_ref.shape
    H = G // 4
    V = out_ref.shape[-1]

    # Loop-invariant operands: load once, stay hot across the unrolled loop.
    rec = rec_ref[...]                                     # (B, 4H)
    m_tab = m_ref[...]                                     # (V, 4H)
    w12 = w12_ref[...]                                     # (H, V)
    b12 = jnp.broadcast_to(b12_ref[...], (B, V))           # broadcast ONCE, not per step

    # Recurrent state carried entirely in vregs (no VMEM round trips).
    c = jnp.zeros((B, H), jnp.float32)                     # cell state
    gates = capg_ref[0]                                    # step-0 input gates (B, 4H)

    # T is small and static -> full unroll; all indices below are static.
    for t in range(T):
        # LSTM cell with constant h_0: only elementwise work is per-step.
        # Apply the nonlinearities to the full (B,4H) vreg (2 EUP pushes),
        # slice the i/f/g/o groups afterwards.  PyTorch gate order: i, f, g, o.
        sg = jax.nn.sigmoid(gates)                         # (B, 4H)
        tg = jnp.tanh(gates)                               # (B, 4H)
        i_g = sg[:, 0 * H:1 * H]
        f_g = sg[:, 1 * H:2 * H]
        g_g = tg[:, 2 * H:3 * H]
        o_g = sg[:, 3 * H:4 * H]
        c = f_g * c + i_g * g_g
        h = o_g * jnp.tanh(c)                              # (B, H)

        # Fused output head: single (B,H)@(H,V) MXU matmul + hoisted bias.
        logits = jnp.dot(h, w12, preferred_element_type=jnp.float32) + b12   # (B, V)
        out_ref[t] = logits                                # one unmasked (8,128) tile store

        # Next-step gates (not needed after the last step — PyTorch computes the
        # selection there but never uses it).
        if t + 1 < T:
            capg_t = capg_ref[t]                           # teacher-forced: caption t again

            def _teacher(capg_t=capg_t):
                return capg_t

            def _greedy(logits=logits):
                # max + equality one-hot (ties are measure-zero for float logits),
                # then fused gather+input-matmul: onehot @ (emb @ W_ih^T) + rec.
                mx = jnp.max(logits, axis=1, keepdims=True)          # (B, 1)
                onehot = (logits == mx).astype(jnp.float32)          # (B, V)
                return jnp.dot(onehot, m_tab,
                               preferred_element_type=jnp.float32) + rec      # (B, 4H)

            gates = lax.cond(tf_ref[t] != 0, _teacher, _greedy)


@jax.jit
def decoder_rnn2_forward(features, captions, tf_flags,
                         emb, w_ih_T, w_hh_T, b_lstm, w1_T, b1, w2_T, b2):
    B, T = captions.shape
    V, E = emb.shape
    H = w_hh_T.shape[0]

    # One-time glue outside the serial recurrence (all loop-invariant algebra):
    cap_emb_t = jnp.transpose(jnp.take(emb, captions, axis=0), (1, 0, 2))     # (T, B, E)
    rec = features @ w_hh_T + b_lstm                      # (B, 4H)  h_0 term + biases
    cap_gates = jnp.einsum('tbe,eg->tbg', cap_emb_t, w_ih_T) + rec            # (T, B, 4H)
    m_tab = emb @ w_ih_T                                  # (V, 4H)  greedy-path table
    w12 = w1_T @ w2_T                                     # (H, V)   fused head weight
    b12 = b1 @ w2_T + b2                                  # (1, V)   fused head bias

    vmem = pltpu.MemorySpace.VMEM
    out_tbv = pl.pallas_call(
        _decoder_kernel,
        out_shape=jax.ShapeDtypeStruct((T, B, V), jnp.float32),
        in_specs=[
            pl.BlockSpec(memory_space=pltpu.MemorySpace.SMEM),   # tf flags  (T,)
            pl.BlockSpec(memory_space=vmem),                     # cap_gates (T, B, 4H)
            pl.BlockSpec(memory_space=vmem),                     # rec       (B, 4H)
            pl.BlockSpec(memory_space=vmem),                     # emb@Wih^T (V, 4H)
            pl.BlockSpec(memory_space=vmem),                     # W12       (H, V)
            pl.BlockSpec(memory_space=vmem),                     # b12       (1, V)
        ],
        out_specs=pl.BlockSpec(memory_space=vmem),
    )(tf_flags, cap_gates, rec, m_tab, w12, b12)

    return jnp.transpose(out_tbv, (1, 0, 2))              # (B, T, V), like PyTorch


def reference_forward(features, captions, tf_flags,
                      emb, w_ih_T, w_hh_T, b_lstm, w1_T, b1, w2_T, b2):
    """Pure-JAX reference with the original (unfused) math, for correctness check."""
    B, T = captions.shape
    H = features.shape[1]
    cap_emb = emb[captions]                               # (B, T, E)
    x = cap_emb[:, 0, :]
    cell = jnp.zeros((B, H), jnp.float32)
    outs = []
    for t in range(T):
        gates = x @ w_ih_T + features @ w_hh_T + b_lstm
        i = jax.nn.sigmoid(gates[:, :H])
        f = jax.nn.sigmoid(gates[:, H:2 * H])
        g = jnp.tanh(gates[:, 2 * H:3 * H])
        o = jax.nn.sigmoid(gates[:, 3 * H:])
        cell = f * cell + i * g
        h = o * jnp.tanh(cell)
        logits = (h @ w1_T + b1) @ w2_T + b2
        outs.append(logits)
        top1 = jnp.argmax(logits, axis=1)
        greedy = emb[top1]
        x = jnp.where(tf_flags[t] != 0, cap_emb[:, t, :], greedy)
    return jnp.stack(outs, axis=1)


if __name__ == "__main__":
    # small shapes: batch=8, seq=8, embed=32, hidden=32, vocab=128
    B, T, E, H, V = 8, 8, 32, 32, 128

    key = jax.random.PRNGKey(0)
    ks = jax.random.split(key, 12)
    s = 0.1
    emb    = jax.random.normal(ks[0], (V, E), jnp.float32) * s
    w_ih_T = jax.random.normal(ks[1], (E, 4 * H), jnp.float32) * s
    w_hh_T = jax.random.normal(ks[2], (H, 4 * H), jnp.float32) * s
    b_lstm = jax.random.normal(ks[3], (1, 4 * H), jnp.float32) * s
    w1_T   = jax.random.normal(ks[4], (H, 2 * H), jnp.float32) * s
    b1     = jax.random.normal(ks[5], (1, 2 * H), jnp.float32) * s
    w2_T   = jax.random.normal(ks[6], (2 * H, V), jnp.float32) * s
    b2     = jax.random.normal(ks[7], (1, V), jnp.float32) * s

    features = jax.random.normal(ks[8], (B, H), jnp.float32) * s
    captions = jax.random.randint(ks[9], (B, T), 0, V, dtype=jnp.int32)
    # PyTorch draws np.random.rand() < teacher_forcing_ratio per step; we make
    # that host-side randomness a deterministic, externally supplied flag vector.
    tf_flags = (jax.random.uniform(ks[10], (T,)) < 0.5).astype(jnp.int32)

    out = decoder_rnn2_forward(features, captions, tf_flags,
                               emb, w_ih_T, w_hh_T, b_lstm, w1_T, b1, w2_T, b2)
    out = jax.block_until_ready(out)

    ref = reference_forward(features, captions, tf_flags,
                            emb, w_ih_T, w_hh_T, b_lstm, w1_T, b1, w2_T, b2)

    assert out.shape == (B, T, V), out.shape
    assert jnp.allclose(out, ref, atol=1e-4, rtol=1e-4), "mismatch vs JAX reference"
    print("KERNEL_OK")
</pallas_src>

<mosaic_0001>
module attributes {stable_mosaic.version = 11 : i64} {
  func.func @_decoder_kernel(%arg0: memref<8xi32, #tpu.memory_space<smem>>, %arg1: memref<8x8x128xf32, #tpu.memory_space<vmem>>, %arg2: memref<8x128xf32, #tpu.memory_space<vmem>>, %arg3: memref<128x128xf32, #tpu.memory_space<vmem>>, %arg4: memref<32x128xf32, #tpu.memory_space<vmem>>, %arg5: memref<1x128xf32, #tpu.memory_space<vmem>>, %arg6: memref<8x8x128xf32, #tpu.memory_space<vmem>>) attributes {dimension_semantics = [], scalar_prefetch = 0 : i64, scratch_operands = 0 : i64, tpu.core_type = #tpu.core_type<tc>} {
    %c0 = arith.constant 0 : index
    %c0_0 = arith.constant 0 : index
    %0 = vector.load %arg2[%c0, %c0_0] : memref<8x128xf32, #tpu.memory_space<vmem>>, vector<8x128xf32>
    %c0_1 = arith.constant 0 : index
    %c0_2 = arith.constant 0 : index
    %1 = vector.load %arg3[%c0_1, %c0_2] : memref<128x128xf32, #tpu.memory_space<vmem>>, vector<128x128xf32>
    %c0_3 = arith.constant 0 : index
    %c0_4 = arith.constant 0 : index
    %2 = vector.load %arg4[%c0_3, %c0_4] : memref<32x128xf32, #tpu.memory_space<vmem>>, vector<32x128xf32>
    %c0_5 = arith.constant 0 : index
    %c0_6 = arith.constant 0 : index
    %3 = vector.load %arg5[%c0_5, %c0_6] : memref<1x128xf32, #tpu.memory_space<vmem>>, vector<1x128xf32>
    %4 = vector.shape_cast %3 : vector<1x128xf32> to vector<1x128xf32>
    %5 = vector.broadcast %4 : vector<1x128xf32> to vector<8x128xf32>
    %cst = arith.constant 0.000000e+00 : f32
    %6 = vector.broadcast %cst : f32 to vector<8x32xf32>
    %c0_7 = arith.constant 0 : index
    %c0_8 = arith.constant 0 : index
    %c0_9 = arith.constant 0 : index
    %7 = vector.load %arg1[%c0_7, %c0_8, %c0_9] : memref<8x8x128xf32, #tpu.memory_space<vmem>>, vector<1x8x128xf32>
    %8 = vector.shape_cast %7 : vector<1x8x128xf32> to vector<8x128xf32>
    %9 = arith.negf %8 : vector<8x128xf32>
    %10 = math.exp %9 : vector<8x128xf32>
    %cst_10 = arith.constant 1.000000e+00 : f32
    %11 = vector.broadcast %cst_10 : f32 to vector<8x128xf32>
    %12 = arith.addf %11, %10 : vector<8x128xf32>
    %13 = arith.divf %11, %12 : vector<8x128xf32>
    %14 = math.tanh %8 : vector<8x128xf32>
    %15 = vector.extract_strided_slice %13 {offsets = [0, 0], sizes = [8, 32], strides = [1, 1]} : vector<8x128xf32> to vector<8x32xf32>
    %16 = vector.extract_strided_slice %13 {offsets = [0, 32], sizes = [8, 32], strides = [1, 1]} : vector<8x128xf32> to vector<8x32xf32>
    %17 = vector.extract_strided_slice %14 {offsets = [0, 64], sizes = [8, 32], strides = [1, 1]} : vector<8x128xf32> to vector<8x32xf32>
    %18 = vector.extract_strided_slice %13 {offsets = [0, 96], sizes = [8, 32], strides = [1, 1]} : vector<8x128xf32> to vector<8x32xf32>
    %19 = arith.mulf %16, %6 : vector<8x32xf32>
    %20 = arith.mulf %15, %17 : vector<8x32xf32>
    %21 = arith.addf %19, %20 : vector<8x32xf32>
    %22 = math.tanh %21 : vector<8x32xf32>
    %23 = arith.mulf %18, %22 : vector<8x32xf32>
    %cst_11 = arith.constant dense<0.000000e+00> : vector<8x128xf32>
    %24 = tpu.matmul %23, %2, %cst_11 {dimension_numbers = #tpu.dot_dimension_numbers<[1], [0], [0], [1], [0, 0, 1, 1], [], []>} : vector<8x32xf32>, vector<32x128xf32>, vector<8x128xf32> -> vector<8x128xf32>
    %25 = arith.addf %24, %5 : vector<8x128xf32>
    %c0_12 = arith.constant 0 : index
    %c0_13 = arith.constant 0 : index
    %c0_14 = arith.constant 0 : index
    %26 = vector.load %arg6[%c0_12, %c0_13, %c0_14] : memref<8x8x128xf32, #tpu.memory_space<vmem>>, vector<1x8x128xf32>
    %27 = vector.shape_cast %26 : vector<1x8x128xf32> to vector<8x128xf32>
    %28 = vector.shape_cast %25 : vector<8x128xf32> to vector<1x8x128xf32>
    tpu.vector_store %arg6[%c0_12, %c0_13, %c0_14], %28 {strides = array<i32>} : memref<8x8x128xf32, #tpu.memory_space<vmem>>, vector<1x8x128xf32>,
    %c0_15 = arith.constant 0 : index
    %c0_16 = arith.constant 0 : index
    %c0_17 = arith.constant 0 : index
    %29 = vector.load %arg1[%c0_15, %c0_16, %c0_17] : memref<8x8x128xf32, #tpu.memory_space<vmem>>, vector<1x8x128xf32>
    %30 = vector.shape_cast %29 : vector<1x8x128xf32> to vector<8x128xf32>
    %c0_18 = arith.constant 0 : index
    %31 = memref.load %arg0[%c0_18] : memref<8xi32, #tpu.memory_space<smem>>
    %c0_i32 = arith.constant 0 : i32
    %32 = arith.cmpi ne, %31, %c0_i32 : i32
    %33 = arith.extui %32 : i1 to i32
    %c0_i32_19 = arith.constant 0 : i32
    %34 = arith.cmpi ne, %33, %c0_i32_19 : i32
    %35 = scf.if %34 -> (vector<8x128xf32>) {
      scf.yield %30 : vector<8x128xf32>
    } else {
      %cst_84 = arith.constant dense<0xFF800000> : vector<8xf32>
      %218 = vector.multi_reduction <maximumf>, %25, %cst_84 [1] : vector<8x128xf32> to vector<8xf32>
      %219 = vector.shape_cast %218 : vector<8xf32> to vector<8x1xf32>
      %220 = vector.broadcast %219 : vector<8x1xf32> to vector<8x128xf32>
      %221 = arith.cmpf oeq, %25, %220 : vector<8x128xf32>
      %222 = arith.extui %221 : vector<8x128xi1> to vector<8x128xi32>
      %223 = arith.sitofp %222 : vector<8x128xi32> to vector<8x128xf32>
      %cst_85 = arith.constant dense<0.000000e+00> : vector<8x128xf32>
      %224 = tpu.matmul %223, %1, %cst_85 {dimension_numbers = #tpu.dot_dimension_numbers<[1], [0], [0], [1], [0, 0, 1, 1], [], []>} : vector<8x128xf32>, vector<128x128xf32>, vector<8x128xf32> -> vector<8x128xf32>
      %225 = arith.addf %224, %0 : vector<8x128xf32>
      scf.yield %225 : vector<8x128xf32>
    }
    %36 = arith.negf %35 : vector<8x128xf32>
    %37 = math.exp %36 : vector<8x128xf32>
    %cst_20 = arith.constant 1.000000e+00 : f32
    %38 = vector.broadcast %cst_20 : f32 to vector<8x128xf32>
    %39 = arith.addf %38, %37 : vector<8x128xf32>
    %40 = arith.divf %38, %39 : vector<8x128xf32>
    %41 = math.tanh %35 : vector<8x128xf32>
    %42 = vector.extract_strided_slice %40 {offsets = [0, 0], sizes = [8, 32], strides = [1, 1]} : vector<8x128xf32> to vector<8x32xf32>
    %43 = vector.extract_strided_slice %40 {offsets = [0, 32], sizes = [8, 32], strides = [1, 1]} : vector<8x128xf32> to vector<8x32xf32>
    %44 = vector.extract_strided_slice %41 {offsets = [0, 64], sizes = [8, 32], strides = [1, 1]} : vector<8x128xf32> to vector<8x32xf32>
    %45 = vector.extract_strided_slice %40 {offsets = [0, 96], sizes = [8, 32], strides = [1, 1]} : vector<8x128xf32> to vector<8x32xf32>
    %46 = arith.mulf %43, %21 : vector<8x32xf32>
    %47 = arith.mulf %42, %44 : vector<8x32xf32>
    %48 = arith.addf %46, %47 : vector<8x32xf32>
    %49 = math.tanh %48 : vector<8x32xf32>
    %50 = arith.mulf %45, %49 : vector<8x32xf32>
    %cst_21 = arith.constant dense<0.000000e+00> : vector<8x128xf32>
    %51 = tpu.matmul %50, %2, %cst_21 {dimension_numbers = #tpu.dot_dimension_numbers<[1], [0], [0], [1], [0, 0, 1, 1], [], []>} : vector<8x32xf32>, vector<32x128xf32>, vector<8x128xf32> -> vector<8x128xf32>
    %52 = arith.addf %51, %5 : vector<8x128xf32>
    %c1 = arith.constant 1 : index
    %c0_22 = arith.constant 0 : index
    %c0_23 = arith.constant 0 : index
    %53 = vector.load %arg6[%c1, %c0_22, %c0_23] : memref<8x8x128xf32, #tpu.memory_space<vmem>>, vector<1x8x128xf32>
    %54 = vector.shape_cast %53 : vector<1x8x128xf32> to vector<8x128xf32>
    %55 = vector.shape_cast %52 : vector<8x128xf32> to vector<1x8x128xf32>
    tpu.vector_store %arg6[%c1, %c0_22, %c0_23], %55 {strides = array<i32>} : memref<8x8x128xf32, #tpu.memory_space<vmem>>, vector<1x8x128xf32>,
    %c1_24 = arith.constant 1 : index
    %c0_25 = arith.constant 0 : index
    %c0_26 = arith.constant 0 : index
    %56 = vector.load %arg1[%c1_24, %c0_25, %c0_26] : memref<8x8x128xf32, #tpu.memory_space<vmem>>, vector<1x8x128xf32>
    %57 = vector.shape_cast %56 : vector<1x8x128xf32> to vector<8x128xf32>
    %c1_27 = arith.constant 1 : index
    %58 = memref.load %arg0[%c1_27] : memref<8xi32, #tpu.memory_space<smem>>
    %c0_i32_28 = arith.constant 0 : i32
    %59 = arith.cmpi ne, %58, %c0_i32_28 : i32
    %60 = arith.extui %59 : i1 to i32
    %c0_i32_29 = arith.constant 0 : i32
    %61 = arith.cmpi ne, %60, %c0_i32_29 : i32
    %62 = scf.if %61 -> (vector<8x128xf32>) {
      scf.yield %57 : vector<8x128xf32>
    } else {
      %cst_84 = arith.constant dense<0xFF800000> : vector<8xf32>
      %218 = vector.multi_reduction <maximumf>, %52, %cst_84 [1] : vector<8x128xf32> to vector<8xf32>
      %219 = vector.shape_cast %218 : vector<8xf32> to vector<8x1xf32>
      %220 = vector.broadcast %219 : vector<8x1xf32> to vector<8x128xf32>
      %221 = arith.cmpf oeq, %52, %220 : vector<8x128xf32>
      %222 = arith.extui %221 : vector<8x128xi1> to vector<8x128xi32>
      %223 = arith.sitofp %222 : vector<8x128xi32> to vector<8x128xf32>
      %cst_85 = arith.constant dense<0.000000e+00> : vector<8x128xf32>
      %224 = tpu.matmul %223, %1, %cst_85 {dimension_numbers = #tpu.dot_dimension_numbers<[1], [0], [0], [1], [0, 0, 1, 1], [], []>} : vector<8x128xf32>, vector<128x128xf32>, vector<8x128xf32> -> vector<8x128xf32>
      %225 = arith.addf %224, %0 : vector<8x128xf32>
      scf.yield %225 : vector<8x128xf32>
    }
    %63 = arith.negf %62 : vector<8x128xf32>
    %64 = math.exp %63 : vector<8x128xf32>
    %cst_30 = arith.constant 1.000000e+00 : f32
    %65 = vector.broadcast %cst_30 : f32 to vector<8x128xf32>
    %66 = arith.addf %65, %64 : vector<8x128xf32>
    %67 = arith.divf %65, %66 : vector<8x128xf32>
    %68 = math.tanh %62 : vector<8x128xf32>
    %69 = vector.extract_strided_slice %67 {offsets = [0, 0], sizes = [8, 32], strides = [1, 1]} : vector<8x128xf32> to vector<8x32xf32>
    %70 = vector.extract_strided_slice %67 {offsets = [0, 32], sizes = [8, 32], strides = [1, 1]} : vector<8x128xf32> to vector<8x32xf32>
    %71 = vector.extract_strided_slice %68 {offsets = [0, 64], sizes = [8, 32], strides = [1, 1]} : vector<8x128xf32> to vector<8x32xf32>
    %72 = vector.extract_strided_slice %67 {offsets = [0, 96], sizes = [8, 32], strides = [1, 1]} : vector<8x128xf32> to vector<8x32xf32>
    %73 = arith.mulf %70, %48 : vector<8x32xf32>
    %74 = arith.mulf %69, %71 : vector<8x32xf32>
    %75 = arith.addf %73, %74 : vector<8x32xf32>
    %76 = math.tanh %75 : vector<8x32xf32>
    %77 = arith.mulf %72, %76 : vector<8x32xf32>
    %cst_31 = arith.constant dense<0.000000e+00> : vector<8x128xf32>
    %78 = tpu.matmul %77, %2, %cst_31 {dimension_numbers = #tpu.dot_dimension_numbers<[1], [0], [0], [1], [0, 0, 1, 1], [], []>} : vector<8x32xf32>, vector<32x128xf32>, vector<8x128xf32> -> vector<8x128xf32>
    %79 = arith.addf %78, %5 : vector<8x128xf32>
    %c2 = arith.constant 2 : index
    %c0_32 = arith.constant 0 : index
    %c0_33 = arith.constant 0 : index
    %80 = vector.load %arg6[%c2, %c0_32, %c0_33] : memref<8x8x128xf32, #tpu.memory_space<vmem>>, vector<1x8x128xf32>
    %81 = vector.shape_cast %80 : vector<1x8x128xf32> to vector<8x128xf32>
    %82 = vector.shape_cast %79 : vector<8x128xf32> to vector<1x8x128xf32>
    tpu.vector_store %arg6[%c2, %c0_32, %c0_33], %82 {strides = array<i32>} : memref<8x8x128xf32, #tpu.memory_space<vmem>>, vector<1x8x128xf32>,
    %c2_34 = arith.constant 2 : index
    %c0_35 = arith.constant 0 : index
    %c0_36 = arith.constant 0 : index
    %83 = vector.load %arg1[%c2_34, %c0_35, %c0_36] : memref<8x8x128xf32, #tpu.memory_space<vmem>>, vector<1x8x128xf32>
    %84 = vector.shape_cast %83 : vector<1x8x128xf32> to vector<8x128xf32>
    %c2_37 = arith.constant 2 : index
    %85 = memref.load %arg0[%c2_37] : memref<8xi32, #tpu.memory_space<smem>>
    %c0_i32_38 = arith.constant 0 : i32
    %86 = arith.cmpi ne, %85, %c0_i32_38 : i32
    %87 = arith.extui %86 : i1 to i32
    %c0_i32_39 = arith.constant 0 : i32
    %88 = arith.cmpi ne, %87, %c0_i32_39 : i32
    %89 = scf.if %88 -> (vector<8x128xf32>) {
      scf.yield %84 : vector<8x128xf32>
    } else {
      %cst_84 = arith.constant dense<0xFF800000> : vector<8xf32>
      %218 = vector.multi_reduction <maximumf>, %79, %cst_84 [1] : vector<8x128xf32> to vector<8xf32>
      %219 = vector.shape_cast %218 : vector<8xf32> to vector<8x1xf32>
      %220 = vector.broadcast %219 : vector<8x1xf32> to vector<8x128xf32>
      %221 = arith.cmpf oeq, %79, %220 : vector<8x128xf32>
      %222 = arith.extui %221 : vector<8x128xi1> to vector<8x128xi32>
      %223 = arith.sitofp %222 : vector<8x128xi32> to vector<8x128xf32>
      %cst_85 = arith.constant dense<0.000000e+00> : vector<8x128xf32>
      %224 = tpu.matmul %223, %1, %cst_85 {dimension_numbers = #tpu.dot_dimension_numbers<[1], [0], [0], [1], [0, 0, 1, 1], [], []>} : vector<8x128xf32>, vector<128x128xf32>, vector<8x128xf32> -> vector<8x128xf32>
      %225 = arith.addf %224, %0 : vector<8x128xf32>
      scf.yield %225 : vector<8x128xf32>
    }
    %90 = arith.negf %89 : vector<8x128xf32>
    %91 = math.exp %90 : vector<8x128xf32>
    %cst_40 = arith.constant 1.000000e+00 : f32
    %92 = vector.broadcast %cst_40 : f32 to vector<8x128xf32>
    %93 = arith.addf %92, %91 : vector<8x128xf32>
    %94 = arith.divf %92, %93 : vector<8x128xf32>
    %95 = math.tanh %89 : vector<8x128xf32>
    %96 = vector.extract_strided_slice %94 {offsets = [0, 0], sizes = [8, 32], strides = [1, 1]} : vector<8x128xf32> to vector<8x32xf32>
    %97 = vector.extract_strided_slice %94 {offsets = [0, 32], sizes = [8, 32], strides = [1, 1]} : vector<8x128xf32> to vector<8x32xf32>
    %98 = vector.extract_strided_slice %95 {offsets = [0, 64], sizes = [8, 32], strides = [1, 1]} : vector<8x128xf32> to vector<8x32xf32>
    %99 = vector.extract_strided_slice %94 {offsets = [0, 96], sizes = [8, 32], strides = [1, 1]} : vector<8x128xf32> to vector<8x32xf32>
    %100 = arith.mulf %97, %75 : vector<8x32xf32>
    %101 = arith.mulf %96, %98 : vector<8x32xf32>
    %102 = arith.addf %100, %101 : vector<8x32xf32>
    %103 = math.tanh %102 : vector<8x32xf32>
    %104 = arith.mulf %99, %103 : vector<8x32xf32>
    %cst_41 = arith.constant dense<0.000000e+00> : vector<8x128xf32>
    %105 = tpu.matmul %104, %2, %cst_41 {dimension_numbers = #tpu.dot_dimension_numbers<[1], [0], [0], [1], [0, 0, 1, 1], [], []>} : vector<8x32xf32>, vector<32x128xf32>, vector<8x128xf32> -> vector<8x128xf32>
    %106 = arith.addf %105, %5 : vector<8x128xf32>
    %c3 = arith.constant 3 : index
    %c0_42 = arith.constant 0 : index
    %c0_43 = arith.constant 0 : index
    %107 = vector.load %arg6[%c3, %c0_42, %c0_43] : memref<8x8x128xf32, #tpu.memory_space<vmem>>, vector<1x8x128xf32>
    %108 = vector.shape_cast %107 : vector<1x8x128xf32> to vector<8x128xf32>
    %109 = vector.shape_cast %106 : vector<8x128xf32> to vector<1x8x128xf32>
    tpu.vector_store %arg6[%c3, %c0_42, %c0_43], %109 {strides = array<i32>} : memref<8x8x128xf32, #tpu.memory_space<vmem>>, vector<1x8x128xf32>,
    %c3_44 = arith.constant 3 : index
    %c0_45 = arith.constant 0 : index
    %c0_46 = arith.constant 0 : index
    %110 = vector.load %arg1[%c3_44, %c0_45, %c0_46] : memref<8x8x128xf32, #tpu.memory_space<vmem>>, vector<1x8x128xf32>
    %111 = vector.shape_cast %110 : vector<1x8x128xf32> to vector<8x128xf32>
    %c3_47 = arith.constant 3 : index
    %112 = memref.load %arg0[%c3_47] : memref<8xi32, #tpu.memory_space<smem>>
    %c0_i32_48 = arith.constant 0 : i32
    %113 = arith.cmpi ne, %112, %c0_i32_48 : i32
    %114 = arith.extui %113 : i1 to i32
    %c0_i32_49 = arith.constant 0 : i32
    %115 = arith.cmpi ne, %114, %c0_i32_49 : i32
    %116 = scf.if %115 -> (vector<8x128xf32>) {
      scf.yield %111 : vector<8x128xf32>
    } else {
      %cst_84 = arith.constant dense<0xFF800000> : vector<8xf32>
      %218 = vector.multi_reduction <maximumf>, %106, %cst_84 [1] : vector<8x128xf32> to vector<8xf32>
      %219 = vector.shape_cast %218 : vector<8xf32> to vector<8x1xf32>
      %220 = vector.broadcast %219 : vector<8x1xf32> to vector<8x128xf32>
      %221 = arith.cmpf oeq, %106, %220 : vector<8x128xf32>
      %222 = arith.extui %221 : vector<8x128xi1> to vector<8x128xi32>
      %223 = arith.sitofp %222 : vector<8x128xi32> to vector<8x128xf32>
      %cst_85 = arith.constant dense<0.000000e+00> : vector<8x128xf32>
      %224 = tpu.matmul %223, %1, %cst_85 {dimension_numbers = #tpu.dot_dimension_numbers<[1], [0], [0], [1], [0, 0, 1, 1], [], []>} : vector<8x128xf32>, vector<128x128xf32>, vector<8x128xf32> -> vector<8x128xf32>
      %225 = arith.addf %224, %0 : vector<8x128xf32>
      scf.yield %225 : vector<8x128xf32>
    }
    %117 = arith.negf %116 : vector<8x128xf32>
    %118 = math.exp %117 : vector<8x128xf32>
    %cst_50 = arith.constant 1.000000e+00 : f32
    %119 = vector.broadcast %cst_50 : f32 to vector<8x128xf32>
    %120 = arith.addf %119, %118 : vector<8x128xf32>
    %121 = arith.divf %119, %120 : vector<8x128xf32>
    %122 = math.tanh %116 : vector<8x128xf32>
    %123 = vector.extract_strided_slice %121 {offsets = [0, 0], sizes = [8, 32], strides = [1, 1]} : vector<8x128xf32> to vector<8x32xf32>
    %124 = vector.extract_strided_slice %121 {offsets = [0, 32], sizes = [8, 32], strides = [1, 1]} : vector<8x128xf32> to vector<8x32xf32>
    %125 = vector.extract_strided_slice %122 {offsets = [0, 64], sizes = [8, 32], strides = [1, 1]} : vector<8x128xf32> to vector<8x32xf32>
    %126 = vector.extract_strided_slice %121 {offsets = [0, 96], sizes = [8, 32], strides = [1, 1]} : vector<8x128xf32> to vector<8x32xf32>
    %127 = arith.mulf %124, %102 : vector<8x32xf32>
    %128 = arith.mulf %123, %125 : vector<8x32xf32>
    %129 = arith.addf %127, %128 : vector<8x32xf32>
    %130 = math.tanh %129 : vector<8x32xf32>
    %131 = arith.mulf %126, %130 : vector<8x32xf32>
    %cst_51 = arith.constant dense<0.000000e+00> : vector<8x128xf32>
    %132 = tpu.matmul %131, %2, %cst_51 {dimension_numbers = #tpu.dot_dimension_numbers<[1], [0], [0], [1], [0, 0, 1, 1], [], []>} : vector<8x32xf32>, vector<32x128xf32>, vector<8x128xf32> -> vector<8x128xf32>
    %133 = arith.addf %132, %5 : vector<8x128xf32>
    %c4 = arith.constant 4 : index
    %c0_52 = arith.constant 0 : index
    %c0_53 = arith.constant 0 : index
    %134 = vector.load %arg6[%c4, %c0_52, %c0_53] : memref<8x8x128xf32, #tpu.memory_space<vmem>>, vector<1x8x128xf32>
    %135 = vector.shape_cast %134 : vector<1x8x128xf32> to vector<8x128xf32>
    %136 = vector.shape_cast %133 : vector<8x128xf32> to vector<1x8x128xf32>
    tpu.vector_store %arg6[%c4, %c0_52, %c0_53], %136 {strides = array<i32>} : memref<8x8x128xf32, #tpu.memory_space<vmem>>, vector<1x8x128xf32>,
    %c4_54 = arith.constant 4 : index
    %c0_55 = arith.constant 0 : index
    %c0_56 = arith.constant 0 : index
    %137 = vector.load %arg1[%c4_54, %c0_55, %c0_56] : memref<8x8x128xf32, #tpu.memory_space<vmem>>, vector<1x8x128xf32>
    %138 = vector.shape_cast %137 : vector<1x8x128xf32> to vector<8x128xf32>
    %c4_57 = arith.constant 4 : index
    %139 = memref.load %arg0[%c4_57] : memref<8xi32, #tpu.memory_space<smem>>
    %c0_i32_58 = arith.constant 0 : i32
    %140 = arith.cmpi ne, %139, %c0_i32_58 : i32
    %141 = arith.extui %140 : i1 to i32
    %c0_i32_59 = arith.constant 0 : i32
    %142 = arith.cmpi ne, %141, %c0_i32_59 : i32
    %143 = scf.if %142 -> (vector<8x128xf32>) {
      scf.yield %138 : vector<8x128xf32>
    } else {
      %cst_84 = arith.constant dense<0xFF800000> : vector<8xf32>
      %218 = vector.multi_reduction <maximumf>, %133, %cst_84 [1] : vector<8x128xf32> to vector<8xf32>
      %219 = vector.shape_cast %218 : vector<8xf32> to vector<8x1xf32>
      %220 = vector.broadcast %219 : vector<8x1xf32> to vector<8x128xf32>
      %221 = arith.cmpf oeq, %133, %220 : vector<8x128xf32>
      %222 = arith.extui %221 : vector<8x128xi1> to vector<8x128xi32>
      %223 = arith.sitofp %222 : vector<8x128xi32> to vector<8x128xf32>
      %cst_85 = arith.constant dense<0.000000e+00> : vector<8x128xf32>
      %224 = tpu.matmul %223, %1, %cst_85 {dimension_numbers = #tpu.dot_dimension_numbers<[1], [0], [0], [1], [0, 0, 1, 1], [], []>} : vector<8x128xf32>, vector<128x128xf32>, vector<8x128xf32> -> vector<8x128xf32>
      %225 = arith.addf %224, %0 : vector<8x128xf32>
      scf.yield %225 : vector<8x128xf32>
    }
    %144 = arith.negf %143 : vector<8x128xf32>
    %145 = math.exp %144 : vector<8x128xf32>
    %cst_60 = arith.constant 1.000000e+00 : f32
    %146 = vector.broadcast %cst_60 : f32 to vector<8x128xf32>
    %147 = arith.addf %146, %145 : vector<8x128xf32>
    %148 = arith.divf %146, %147 : vector<8x128xf32>
    %149 = math.tanh %143 : vector<8x128xf32>
    %150 = vector.extract_strided_slice %148 {offsets = [0, 0], sizes = [8, 32], strides = [1, 1]} : vector<8x128xf32> to vector<8x32xf32>
    %151 = vector.extract_strided_slice %148 {offsets = [0, 32], sizes = [8, 32], strides = [1, 1]} : vector<8x128xf32> to vector<8x32xf32>
    %152 = vector.extract_strided_slice %149 {offsets = [0, 64], sizes = [8, 32], strides = [1, 1]} : vector<8x128xf32> to vector<8x32xf32>
    %153 = vector.extract_strided_slice %148 {offsets = [0, 96], sizes = [8, 32], strides = [1, 1]} : vector<8x128xf32> to vector<8x32xf32>
    %154 = arith.mulf %151, %129 : vector<8x32xf32>
    %155 = arith.mulf %150, %152 : vector<8x32xf32>
    %156 = arith.addf %154, %155 : vector<8x32xf32>
    %157 = math.tanh %156 : vector<8x32xf32>
    %158 = arith.mulf %153, %157 : vector<8x32xf32>
    %cst_61 = arith.constant dense<0.000000e+00> : vector<8x128xf32>
    %159 = tpu.matmul %158, %2, %cst_61 {dimension_numbers = #tpu.dot_dimension_numbers<[1], [0], [0], [1], [0, 0, 1, 1], [], []>} : vector<8x32xf32>, vector<32x128xf32>, vector<8x128xf32> -> vector<8x128xf32>
    %160 = arith.addf %159, %5 : vector<8x128xf32>
    %c5 = arith.constant 5 : index
    %c0_62 = arith.constant 0 : index
    %c0_63 = arith.constant 0 : index
    %161 = vector.load %arg6[%c5, %c0_62, %c0_63] : memref<8x8x128xf32, #tpu.memory_space<vmem>>, vector<1x8x128xf32>
    %162 = vector.shape_cast %161 : vector<1x8x128xf32> to vector<8x128xf32>
    %163 = vector.shape_cast %160 : vector<8x128xf32> to vector<1x8x128xf32>
    tpu.vector_store %arg6[%c5, %c0_62, %c0_63], %163 {strides = array<i32>} : memref<8x8x128xf32, #tpu.memory_space<vmem>>, vector<1x8x128xf32>,
    %c5_64 = arith.constant 5 : index
    %c0_65 = arith.constant 0 : index
    %c0_66 = arith.constant 0 : index
    %164 = vector.load %arg1[%c5_64, %c0_65, %c0_66] : memref<8x8x128xf32, #tpu.memory_space<vmem>>, vector<1x8x128xf32>
    %165 = vector.shape_cast %164 : vector<1x8x128xf32> to vector<8x128xf32>
    %c5_67 = arith.constant 5 : index
    %166 = memref.load %arg0[%c5_67] : memref<8xi32, #tpu.memory_space<smem>>
    %c0_i32_68 = arith.constant 0 : i32
    %167 = arith.cmpi ne, %166, %c0_i32_68 : i32
    %168 = arith.extui %167 : i1 to i32
    %c0_i32_69 = arith.constant 0 : i32
    %169 = arith.cmpi ne, %168, %c0_i32_69 : i32
    %170 = scf.if %169 -> (vector<8x128xf32>) {
      scf.yield %165 : vector<8x128xf32>
    } else {
      %cst_84 = arith.constant dense<0xFF800000> : vector<8xf32>
      %218 = vector.multi_reduction <maximumf>, %160, %cst_84 [1] : vector<8x128xf32> to vector<8xf32>
      %219 = vector.shape_cast %218 : vector<8xf32> to vector<8x1xf32>
      %220 = vector.broadcast %219 : vector<8x1xf32> to vector<8x128xf32>
      %221 = arith.cmpf oeq, %160, %220 : vector<8x128xf32>
      %222 = arith.extui %221 : vector<8x128xi1> to vector<8x128xi32>
      %223 = arith.sitofp %222 : vector<8x128xi32> to vector<8x128xf32>
      %cst_85 = arith.constant dense<0.000000e+00> : vector<8x128xf32>
      %224 = tpu.matmul %223, %1, %cst_85 {dimension_numbers = #tpu.dot_dimension_numbers<[1], [0], [0], [1], [0, 0, 1, 1], [], []>} : vector<8x128xf32>, vector<128x128xf32>, vector<8x128xf32> -> vector<8x128xf32>
      %225 = arith.addf %224, %0 : vector<8x128xf32>
      scf.yield %225 : vector<8x128xf32>
    }
    %171 = arith.negf %170 : vector<8x128xf32>
    %172 = math.exp %171 : vector<8x128xf32>
    %cst_70 = arith.constant 1.000000e+00 : f32
    %173 = vector.broadcast %cst_70 : f32 to vector<8x128xf32>
    %174 = arith.addf %173, %172 : vector<8x128xf32>
    %175 = arith.divf %173, %174 : vector<8x128xf32>
    %176 = math.tanh %170 : vector<8x128xf32>
    %177 = vector.extract_strided_slice %175 {offsets = [0, 0], sizes = [8, 32], strides = [1, 1]} : vector<8x128xf32> to vector<8x32xf32>
    %178 = vector.extract_strided_slice %175 {offsets = [0, 32], sizes = [8, 32], strides = [1, 1]} : vector<8x128xf32> to vector<8x32xf32>
    %179 = vector.extract_strided_slice %176 {offsets = [0, 64], sizes = [8, 32], strides = [1, 1]} : vector<8x128xf32> to vector<8x32xf32>
    %180 = vector.extract_strided_slice %175 {offsets = [0, 96], sizes = [8, 32], strides = [1, 1]} : vector<8x128xf32> to vector<8x32xf32>
    %181 = arith.mulf %178, %156 : vector<8x32xf32>
    %182 = arith.mulf %177, %179 : vector<8x32xf32>
    %183 = arith.addf %181, %182 : vector<8x32xf32>
    %184 = math.tanh %183 : vector<8x32xf32>
    %185 = arith.mulf %180, %184 : vector<8x32xf32>
    %cst_71 = arith.constant dense<0.000000e+00> : vector<8x128xf32>
    %186 = tpu.matmul %185, %2, %cst_71 {dimension_numbers = #tpu.dot_dimension_numbers<[1], [0], [0], [1], [0, 0, 1, 1], [], []>} : vector<8x32xf32>, vector<32x128xf32>, vector<8x128xf32> -> vector<8x128xf32>
    %187 = arith.addf %186, %5 : vector<8x128xf32>
    %c6 = arith.constant 6 : index
    %c0_72 = arith.constant 0 : index
    %c0_73 = arith.constant 0 : index
    %188 = vector.load %arg6[%c6, %c0_72, %c0_73] : memref<8x8x128xf32, #tpu.memory_space<vmem>>, vector<1x8x128xf32>
    %189 = vector.shape_cast %188 : vector<1x8x128xf32> to vector<8x128xf32>
    %190 = vector.shape_cast %187 : vector<8x128xf32> to vector<1x8x128xf32>
    tpu.vector_store %arg6[%c6, %c0_72, %c0_73], %190 {strides = array<i32>} : memref<8x8x128xf32, #tpu.memory_space<vmem>>, vector<1x8x128xf32>,
    %c6_74 = arith.constant 6 : index
    %c0_75 = arith.constant 0 : index
    %c0_76 = arith.constant 0 : index
    %191 = vector.load %arg1[%c6_74, %c0_75, %c0_76] : memref<8x8x128xf32, #tpu.memory_space<vmem>>, vector<1x8x128xf32>
    %192 = vector.shape_cast %191 : vector<1x8x128xf32> to vector<8x128xf32>
    %c6_77 = arith.constant 6 : index
    %193 = memref.load %arg0[%c6_77] : memref<8xi32, #tpu.memory_space<smem>>
    %c0_i32_78 = arith.constant 0 : i32
    %194 = arith.cmpi ne, %193, %c0_i32_78 : i32
    %195 = arith.extui %194 : i1 to i32
    %c0_i32_79 = arith.constant 0 : i32
    %196 = arith.cmpi ne, %195, %c0_i32_79 : i32
    %197 = scf.if %196 -> (vector<8x128xf32>) {
      scf.yield %192 : vector<8x128xf32>
    } else {
      %cst_84 = arith.constant dense<0xFF800000> : vector<8xf32>
      %218 = vector.multi_reduction <maximumf>, %187, %cst_84 [1] : vector<8x128xf32> to vector<8xf32>
      %219 = vector.shape_cast %218 : vector<8xf32> to vector<8x1xf32>
      %220 = vector.broadcast %219 : vector<8x1xf32> to vector<8x128xf32>
      %221 = arith.cmpf oeq, %187, %220 : vector<8x128xf32>
      %222 = arith.extui %221 : vector<8x128xi1> to vector<8x128xi32>
      %223 = arith.sitofp %222 : vector<8x128xi32> to vector<8x128xf32>
      %cst_85 = arith.constant dense<0.000000e+00> : vector<8x128xf32>
      %224 = tpu.matmul %223, %1, %cst_85 {dimension_numbers = #tpu.dot_dimension_numbers<[1], [0], [0], [1], [0, 0, 1, 1], [], []>} : vector<8x128xf32>, vector<128x128xf32>, vector<8x128xf32> -> vector<8x128xf32>
      %225 = arith.addf %224, %0 : vector<8x128xf32>
      scf.yield %225 : vector<8x128xf32>
    }
    %198 = arith.negf %197 : vector<8x128xf32>
    %199 = math.exp %198 : vector<8x128xf32>
    %cst_80 = arith.constant 1.000000e+00 : f32
    %200 = vector.broadcast %cst_80 : f32 to vector<8x128xf32>
    %201 = arith.addf %200, %199 : vector<8x128xf32>
    %202 = arith.divf %200, %201 : vector<8x128xf32>
    %203 = math.tanh %197 : vector<8x128xf32>
    %204 = vector.extract_strided_slice %202 {offsets = [0, 0], sizes = [8, 32], strides = [1, 1]} : vector<8x128xf32> to vector<8x32xf32>
    %205 = vector.extract_strided_slice %202 {offsets = [0, 32], sizes = [8, 32], strides = [1, 1]} : vector<8x128xf32> to vector<8x32xf32>
    %206 = vector.extract_strided_slice %203 {offsets = [0, 64], sizes = [8, 32], strides = [1, 1]} : vector<8x128xf32> to vector<8x32xf32>
    %207 = vector.extract_strided_slice %202 {offsets = [0, 96], sizes = [8, 32], strides = [1, 1]} : vector<8x128xf32> to vector<8x32xf32>
    %208 = arith.mulf %205, %183 : vector<8x32xf32>
    %209 = arith.mulf %204, %206 : vector<8x32xf32>
    %210 = arith.addf %208, %209 : vector<8x32xf32>
    %211 = math.tanh %210 : vector<8x32xf32>
    %212 = arith.mulf %207, %211 : vector<8x32xf32>
    %cst_81 = arith.constant dense<0.000000e+00> : vector<8x128xf32>
    %213 = tpu.matmul %212, %2, %cst_81 {dimension_numbers = #tpu.dot_dimension_numbers<[1], [0], [0], [1], [0, 0, 1, 1], [], []>} : vector<8x32xf32>, vector<32x128xf32>, vector<8x128xf32> -> vector<8x128xf32>
    %214 = arith.addf %213, %5 : vector<8x128xf32>
    %c7 = arith.constant 7 : index
    %c0_82 = arith.constant 0 : index
    %c0_83 = arith.constant 0 : index
    %215 = vector.load %arg6[%c7, %c0_82, %c0_83] : memref<8x8x128xf32, #tpu.memory_space<vmem>>, vector<1x8x128xf32>
    %216 = vector.shape_cast %215 : vector<1x8x128xf32> to vector<8x128xf32>
    %217 = vector.shape_cast %214 : vector<8x128xf32> to vector<1x8x128xf32>
    tpu.vector_store %arg6[%c7, %c0_82, %c0_83], %217 {strides = array<i32>} : memref<8x8x128xf32, #tpu.memory_space<vmem>>, vector<1x8x128xf32>,
    return
  }
}

</mosaic_0001>

<llo_original>
// kernel: decoder_rnn2_forward.1
$region0: #{decoder_rnn2_forward.1}
  #allocation0 [shape = 'u32[]', space=smem, size = 0x4, offset = 0x4, fixed_abs, tag = 'smem constant byte address 0x4 - core index']
  #allocation1 [shape = 'u32[144,128]{1,0:T(1,128)}', space=vmem, size = 0x12000, scoped, tag = 'internal scratch']
  %s0 = inlined_call_operand.vmem [shape: s32[8], index: 0, kind: input, shape index: {}]
  %s1 = inlined_call_operand.vmem [shape: f32[8,8,128], index: 1, kind: input, shape index: {}]
  %s2 = inlined_call_operand.vmem [shape: f32[8,128], index: 2, kind: input, shape index: {}]
  %s3 = inlined_call_operand.vmem [shape: f32[128,128], index: 3, kind: input, shape index: {}]
  %s4 = inlined_call_operand.vmem [shape: f32[32,128], index: 4, kind: input, shape index: {}]
  %s5 = inlined_call_operand.vmem [shape: f32[1,128], index: 5, kind: input, shape index: {}]
  %s6 = inlined_call_operand.vmem [shape: f32[8,8,128], index: 6, kind: output, shape index: {}]
  %s7 = sld [smem:[#allocation0]]
  $region94: #{decoder_rnn2_forward.1} parent=0
    _
  %s9 = ssub.s32 1, %s7
  %s10 = scalar_select 0, %s9, %s7
  $region1: #{decoder_rnn2_forward.1} parent=0
    #allocation2 [shape = 'u8[512]{0}', space=smem, size = 0x200, scoped, tag = 'input window, operand 0, single buffered']
    #allocation3 [shape = 's32[1]{0}', space=sflag, size = 0x4, scoped, tag = 'scoped memory for decoder_rnn2_forward.1']
    %11 = vsyncpa [#allocation3], 0
    // Predicated region
    $region2: #{decoder_rnn2_forward.1} parent=1 // pred_check
      _
    $region3: #{decoder_rnn2_forward.1} parent=1 // pred_check_branch
      %13 = sbr.rel (0) target = $region5
    $region4: #{decoder_rnn2_forward.1} parent=1 // pred_region
      %s15 = ssub.s32 16, 16
      %16 = vsyncadd [#allocation3], %s15
      %s18 = sshll.u32 %s0, 4
      %s19 = int_to_ptr.vmem [resolvable:$true] %s18
      %21 = dma.vmem_to_smem %s19, 16, [#allocation2], [#allocation3]
    $region5: #{decoder_rnn2_forward.1} parent=1 // pred_fallthru
      _
    // Predicated region
    $region6: #{decoder_rnn2_forward.1} parent=1 // pred_check
      _
    $region7: #{decoder_rnn2_forward.1} parent=1 // pred_check_branch
      %23 = sbr.rel (0) target = $region9
    $region8: #{decoder_rnn2_forward.1} parent=1 // pred_region
      _
    $region9: #{decoder_rnn2_forward.1} parent=1 // pred_fallthru
      _
    // Predicated region
    $region10: #{decoder_rnn2_forward.1} parent=1 // pred_check
      _
    $region11: #{decoder_rnn2_forward.1} parent=1 // pred_check_branch
      %25 = sbr.rel (0) target = $region13
    $region12: #{decoder_rnn2_forward.1} parent=1 // pred_region
      _
    $region13: #{decoder_rnn2_forward.1} parent=1 // pred_fallthru
      _
    // Predicated region
    $region14: #{decoder_rnn2_forward.1} parent=1 // pred_check
      _
    $region15: #{decoder_rnn2_forward.1} parent=1 // pred_check_branch
      %27 = sbr.rel (0) target = $region17
    $region16: #{decoder_rnn2_forward.1} parent=1 // pred_region
      _
    $region17: #{decoder_rnn2_forward.1} parent=1 // pred_fallthru
      _
    // Predicated region
    $region18: #{decoder_rnn2_forward.1} parent=1 // pred_check
      _
    $region19: #{decoder_rnn2_forward.1} parent=1 // pred_check_branch
      %29 = sbr.rel (0) target = $region21
    $region20: #{decoder_rnn2_forward.1} parent=1 // pred_region
      _
    $region21: #{decoder_rnn2_forward.1} parent=1 // pred_fallthru
      _
    // Predicated region
    $region22: #{decoder_rnn2_forward.1} parent=1 // pred_check
      _
    $region23: #{decoder_rnn2_forward.1} parent=1 // pred_check_branch
      %31 = sbr.rel (0) target = $region25
    $region24: #{decoder_rnn2_forward.1} parent=1 // pred_region
      _
    $region25: #{decoder_rnn2_forward.1} parent=1 // pred_fallthru
      _
    // Predicated region
    $region26: #{decoder_rnn2_forward.1} parent=1 // pred_check
      _
    $region27: #{decoder_rnn2_forward.1} parent=1 // pred_check_branch
      %33 = sbr.rel (0) target = $region29
    $region28: #{decoder_rnn2_forward.1} parent=1 // pred_region
      %34 = dma.done [#allocation3], 16
    $region29: #{decoder_rnn2_forward.1} parent=1 // pred_fallthru
      _
    %35 = sfence
    %v36 = vld [vmem:[%s2] sm:$0xff]
    %v37 = vld [vmem:[%s3] sm:$0xff]
    %v38 = vld [vmem:[%s3 + $0x8] sm:$0xff]
    %v39 = vld [vmem:[%s3 + $0x10] sm:$0xff]
    %v40 = vld [vmem:[%s3 + $0x18] sm:$0xff]
    %v41 = vld [vmem:[%s3 + $0x20] sm:$0xff]
    %v42 = vld [vmem:[%s3 + $0x28] sm:$0xff]
    %v43 = vld [vmem:[%s3 + $0x30] sm:$0xff]
    %v44 = vld [vmem:[%s3 + $0x38] sm:$0xff]
    %v45 = vld [vmem:[%s3 + $0x40] sm:$0xff]
    %v46 = vld [vmem:[%s3 + $0x48] sm:$0xff]
    %v47 = vld [vmem:[%s3 + $0x50] sm:$0xff]
    %v48 = vld [vmem:[%s3 + $0x58] sm:$0xff]
    %v49 = vld [vmem:[%s3 + $0x60] sm:$0xff]
    %v50 = vld [vmem:[%s3 + $0x68] sm:$0xff]
    %v51 = vld [vmem:[%s3 + $0x70] sm:$0xff]
    %v52 = vld [vmem:[%s3 + $0x78] sm:$0xff]
    %v53 = vld [vmem:[%s4] sm:$0xff]
    %v54 = vld [vmem:[%s4 + $0x8] sm:$0xff]
    %v55 = vld [vmem:[%s4 + $0x10] sm:$0xff]
    %v56 = vld [vmem:[%s4 + $0x18] sm:$0xff]
    %v57 = vld [vmem:[%s5] sm:$0x1]
    %v59 = vlaneseq
    %v60 = vshrl.u32 %v59, 7
    %v61 = vsub.s32 0, %v60
    %v62 = vrot.slane %v57, %v61
    %v64 = vld [vmem:[%s1] sm:$0xff]
    %v65 = vxor.u32 %v64, 2147483648
    %v66 = vmul.f32 %v65, 1.442695
    %v67 = vpow.pop %v66
    %v68 = vadd.f32 %v67, 1.0
    %v69 = vrcp.pop %v68
    %v70 = vmul.f32 1.0, %v69
    %v71 = vtanh.pop %v64
    %v72 = vmul.f32 %v70, 0.0
    %74 = vrot.lane.b32.xlu0 %v71, 64
    %v75 = vpop.permute.xlu0 %74
    %v77 = vmul.f32 %v70, %v75
    %79 = vrot.lane.b32.xlu0 %v77, 32
    %v80 = vpop.permute.xlu0 %79
    %v82 = vadd.f32 %v72, %v80
    %v83 = vtanh.pop %v82
    %85 = vrot.lane.b32.xlu0 %v83, 64
    %v86 = vpop.permute.xlu0 %85
    %v88 = vmul.f32 %v70, %v86
    %90 = vrot.lane.b32.xlu0 %v88, 32
    %v91 = vpop.permute.xlu0 %90
    %vm92 = vcmask 261120
    %v93 = vsel %vm92, %v91, 0
    %95 = vmatprep.subr.mxu0 0.0
    %96 = vmatpush1.msra.mxu0 %v53
    %97 = vmatprep.subr.mxu0 0.0
    %98 = vmatpush1.msra.mxu0 %v54
    %99 = vmatprep.subr.mxu0 0.0
    %100 = vmatpush1.msra.mxu0 %v55
    %101 = vmatprep.subr.mxu0 0.0
    %102 = vmatpush1.msra.mxu0 %v56
    %103 = vmatprep.subr.mxu0 0.0
    %104 = vmatpush1.msra.mxu0 0.0
    %105 = vmatprep.subr.mxu0 0.0
    %106 = vmatpush1.msra.mxu0 0.0
    %107 = vmatprep.subr.mxu0 0.0
    %108 = vmatpush1.msra.mxu0 0.0
    %109 = vmatprep.subr.mxu0 0.0
    %110 = vmatpush1.msra.mxu0 0.0
    %111 = vmatprep.subr.mxu0 0.0
    %112 = vmatpush1.msra.mxu0 0.0
    %113 = vmatprep.subr.mxu0 0.0
    %114 = vmatpush1.msra.mxu0 0.0
    %115 = vmatprep.subr.mxu0 0.0
    %116 = vmatpush1.msra.mxu0 0.0
    %117 = vmatprep.subr.mxu0 0.0
    %118 = vmatpush1.msra.mxu0 0.0
    %119 = vmatprep.subr.mxu0 0.0
    %120 = vmatpush1.msra.mxu0 0.0
    %121 = vmatprep.subr.mxu0 0.0
    %122 = vmatpush1.msra.mxu0 0.0
    %123 = vmatprep.subr.mxu0 0.0
    %124 = vmatpush1.msra.mxu0 0.0
    %125 = vmatprep.subr.mxu0 0.0
    %126 = vmatpush1.msra.mxu0 0.0
    %127 = vmatprep.subr.mxu0 0.0
    %128 = vmatpush1.msra.mxu0 0.0
    %129 = vmatprep.subr.mxu0 0.0
    %130 = vmatpush1.msra.mxu0 0.0
    %131 = vmatprep.subr.mxu0 0.0
    %132 = vmatpush1.msra.mxu0 0.0
    %133 = vmatprep.subr.mxu0 0.0
    %134 = vmatpush1.msra.mxu0 0.0
    %135 = vmatprep.subr.mxu0 0.0
    %136 = vmatpush1.msra.mxu0 0.0
    %137 = vmatprep.subr.mxu0 0.0
    %138 = vmatpush1.msra.mxu0 0.0
    %139 = vmatprep.subr.mxu0 0.0
    %140 = vmatpush1.msra.mxu0 0.0
    %141 = vmatprep.subr.mxu0 0.0
    %142 = vmatpush1.msra.mxu0 0.0
    %143 = vmatprep.subr.mxu0 0.0
    %144 = vmatpush1.msra.mxu0 0.0
    %145 = vmatprep.subr.mxu0 0.0
    %146 = vmatpush1.msra.mxu0 0.0
    %147 = vmatprep.subr.mxu0 0.0
    %148 = vmatpush1.msra.mxu0 0.0
    %149 = vmatprep.subr.mxu0 0.0
    %150 = vmatpush1.msra.mxu0 0.0
    %151 = vmatprep.subr.mxu0 0.0
    %152 = vmatpush1.msra.mxu0 0.0
    %153 = vmatprep.subr.mxu0 0.0
    %154 = vmatpush1.msra.mxu0 0.0
    %155 = vmatprep.subr.mxu0 0.0
    %156 = vmatpush1.msra.mxu0 0.0
    %157 = vmatprep.subr.mxu0 0.0
    %158 = vmatpush1.msra.mxu0 0.0
    %159 = vmatprep.mubr.f32.mxu0 0.0
    %160 = vmatmul.mubr.f32.gmra.mrb[0].mxu0 %v93
    %v161 = vpop.f32.mrb[0].mxu0
    %v162 = vadd.f32 %v62, %v161
    %v163 = vpop.f32.mrb[0].mxu0
    %164 = vdwg.mxu0
    %165 = vst [vmem:[%s6] sm:$0xff] %v162
    %v166 = vld [vmem:[%s1] sm:$0xff]
    %s167 = sld [smem:[#allocation2]]
    %p168 = scmp.ne.s32.totalorder %s167, 0
    // Predicated region
    $region30: #{decoder_rnn2_forward.1} parent=1 // pred_check
      %p169 = pneg %p168
    $region31: #{decoder_rnn2_forward.1} parent=1 // pred_check_branch
      %171 = sbr.rel (%p169) target = $region33
    $region32: #{decoder_rnn2_forward.1} parent=1 // pred_region
      _
    $region33: #{decoder_rnn2_forward.1} parent=1 // pred_fallthru
      _
    %p172 = pneg %p168
    // Predicated region
    $region34: #{decoder_rnn2_forward.1} parent=1 // pred_check
      _
    $region35: #{decoder_rnn2_forward.1} parent=1 // pred_check_branch
      %174 = sbr.rel (%p168) target = $region37
    $region36: #{decoder_rnn2_forward.1} parent=1 // pred_region
      %175 = vmax.xlane.f32.xlu0 %v162
      %v176 = vpop.xlane.xlu0 %175
      %vm177 = vcmp.eq.f32.partialorder %v162, %v176
      %v178 = vsel %vm177, 1, 0
      %v179 = vcvt.s32.f32 %v178
      %180 = vmatprep.subr.mxu0 0.0
      %181 = vmatpush1.msra.mxu0 %v37
      %182 = vmatprep.subr.mxu0 0.0
      %183 = vmatpush1.msra.mxu0 %v38
      %184 = vmatprep.subr.mxu0 0.0
      %185 = vmatpush1.msra.mxu0 %v39
      %186 = vmatprep.subr.mxu0 0.0
      %187 = vmatpush1.msra.mxu0 %v40
      %188 = vmatprep.subr.mxu0 0.0
      %189 = vmatpush1.msra.mxu0 %v41
      %190 = vmatprep.subr.mxu0 0.0
      %191 = vmatpush1.msra.mxu0 %v42
      %192 = vmatprep.subr.mxu0 0.0
      %193 = vmatpush1.msra.mxu0 %v43
      %194 = vmatprep.subr.mxu0 0.0
      %195 = vmatpush1.msra.mxu0 %v44
      %196 = vmatprep.subr.mxu0 0.0
      %197 = vmatpush1.msra.mxu0 %v45
      %198 = vmatprep.subr.mxu0 0.0
      %199 = vmatpush1.msra.mxu0 %v46
      %200 = vmatprep.subr.mxu0 0.0
      %201 = vmatpush1.msra.mxu0 %v47
      %202 = vmatprep.subr.mxu0 0.0
      %203 = vmatpush1.msra.mxu0 %v48
      %204 = vmatprep.subr.mxu0 0.0
      %205 = vmatpush1.msra.mxu0 %v49
      %206 = vmatprep.subr.mxu0 0.0
      %207 = vmatpush1.msra.mxu0 %v50
      %208 = vmatprep.subr.mxu0 0.0
      %209 = vmatpush1.msra.mxu0 %v51
      %210 = vmatprep.subr.mxu0 0.0
      %211 = vmatpush1.msra.mxu0 %v52
      %212 = vmatprep.subr.mxu0 0.0
      %213 = vmatpush1.msra.mxu0 0.0
      %214 = vmatprep.subr.mxu0 0.0
      %215 = vmatpush1.msra.mxu0 0.0
      %216 = vmatprep.subr.mxu0 0.0
      %217 = vmatpush1.msra.mxu0 0.0
      %218 = vmatprep.subr.mxu0 0.0
      %219 = vmatpush1.msra.mxu0 0.0
      %220 = vmatprep.subr.mxu0 0.0
      %221 = vmatpush1.msra.mxu0 0.0
      %222 = vmatprep.subr.mxu0 0.0
      %223 = vmatpush1.msra.mxu0 0.0
      %224 = vmatprep.subr.mxu0 0.0
      %225 = vmatpush1.msra.mxu0 0.0
      %226 = vmatprep.subr.mxu0 0.0
      %227 = vmatpush1.msra.mxu0 0.0
      %228 = vmatprep.subr.mxu0 0.0
      %229 = vmatpush1.msra.mxu0 0.0
      %230 = vmatprep.subr.mxu0 0.0
      %231 = vmatpush1.msra.mxu0 0.0
      %232 = vmatprep.subr.mxu0 0.0
      %233 = vmatpush1.msra.mxu0 0.0
      %234 = vmatprep.subr.mxu0 0.0
      %235 = vmatpush1.msra.mxu0 0.0
      %236 = vmatprep.subr.mxu0 0.0
      %237 = vmatpush1.msra.mxu0 0.0
      %238 = vmatprep.subr.mxu0 0.0
      %239 = vmatpush1.msra.mxu0 0.0
      %240 = vmatprep.subr.mxu0 0.0
      %241 = vmatpush1.msra.mxu0 0.0
      %242 = vmatprep.subr.mxu0 0.0
      %243 = vmatpush1.msra.mxu0 0.0
      %244 = vmatprep.mubr.f32.mxu0 0.0
      %245 = vmatmul.mubr.f32.gmra.mrb[0].mxu0 %v179
      %v246 = vpop.f32.mrb[0].mxu0
      %v247 = vadd.f32 %v36, %v246
      %v248 = vpop.f32.mrb[0].mxu0
      %249 = vdwg.mxu0
    $region37: #{decoder_rnn2_forward.1} parent=1 // pred_fallthru
      %v250 = vphi %v166, %v247
    %v251 = vxor.u32 %v250, 2147483648
    %v252 = vmul.f32 %v251, 1.442695
    %v253 = vpow.pop %v252
    %v254 = vadd.f32 %v253, 1.0
    %v255 = vrcp.pop %v254
    %v256 = vmul.f32 1.0, %v255
    %v257 = vtanh.pop %v250
    %v258 = vmul.f32 %v256, %v82
    %260 = vrot.lane.b32.xlu0 %v257, 64
    %v261 = vpop.permute.xlu0 %260
    %v263 = vmul.f32 %v256, %v261
    %265 = vrot.lane.b32.xlu0 %v263, 32
    %v266 = vpop.permute.xlu0 %265
    %v268 = vadd.f32 %v258, %v266
    %v269 = vtanh.pop %v268
    %271 = vrot.lane.b32.xlu0 %v269, 64
    %v272 = vpop.permute.xlu0 %271
    %v274 = vmul.f32 %v256, %v272
    %276 = vrot.lane.b32.xlu0 %v274, 32
    %v277 = vpop.permute.xlu0 %276
    %v278 = vsel %vm92, %v277, 0
    %280 = vmatprep.subr.mxu0 0.0
    %281 = vmatpush1.msra.mxu0 %v53
    %282 = vmatprep.subr.mxu0 0.0
    %283 = vmatpush1.msra.mxu0 %v54
    %284 = vmatprep.subr.mxu0 0.0
    %285 = vmatpush1.msra.mxu0 %v55
    %286 = vmatprep.subr.mxu0 0.0
    %287 = vmatpush1.msra.mxu0 %v56
    %288 = vmatprep.subr.mxu0 0.0
    %289 = vmatpush1.msra.mxu0 0.0
    %290 = vmatprep.subr.mxu0 0.0
    %291 = vmatpush1.msra.mxu0 0.0
    %292 = vmatprep.subr.mxu0 0.0
    %293 = vmatpush1.msra.mxu0 0.0
    %294 = vmatprep.subr.mxu0 0.0
    %295 = vmatpush1.msra.mxu0 0.0
    %296 = vmatprep.subr.mxu0 0.0
    %297 = vmatpush1.msra.mxu0 0.0
    %298 = vmatprep.subr.mxu0 0.0
    %299 = vmatpush1.msra.mxu0 0.0
    %300 = vmatprep.subr.mxu0 0.0
    %301 = vmatpush1.msra.mxu0 0.0
    %302 = vmatprep.subr.mxu0 0.0
    %303 = vmatpush1.msra.mxu0 0.0
    %304 = vmatprep.subr.mxu0 0.0
    %305 = vmatpush1.msra.mxu0 0.0
    %306 = vmatprep.subr.mxu0 0.0
    %307 = vmatpush1.msra.mxu0 0.0
    %308 = vmatprep.subr.mxu0 0.0
    %309 = vmatpush1.msra.mxu0 0.0
    %310 = vmatprep.subr.mxu0 0.0
    %311 = vmatpush1.msra.mxu0 0.0
    %312 = vmatprep.subr.mxu0 0.0
    %313 = vmatpush1.msra.mxu0 0.0
    %314 = vmatprep.subr.mxu0 0.0
    %315 = vmatpush1.msra.mxu0 0.0
    %316 = vmatprep.subr.mxu0 0.0
    %317 = vmatpush1.msra.mxu0 0.0
    %318 = vmatprep.subr.mxu0 0.0
    %319 = vmatpush1.msra.mxu0 0.0
    %320 = vmatprep.subr.mxu0 0.0
    %321 = vmatpush1.msra.mxu0 0.0
    %322 = vmatprep.subr.mxu0 0.0
    %323 = vmatpush1.msra.mxu0 0.0
    %324 = vmatprep.subr.mxu0 0.0
    %325 = vmatpush1.msra.mxu0 0.0
    %326 = vmatprep.subr.mxu0 0.0
    %327 = vmatpush1.msra.mxu0 0.0
    %328 = vmatprep.subr.mxu0 0.0
    %329 = vmatpush1.msra.mxu0 0.0
    %330 = vmatprep.subr.mxu0 0.0
    %331 = vmatpush1.msra.mxu0 0.0
    %332 = vmatprep.subr.mxu0 0.0
    %333 = vmatpush1.msra.mxu0 0.0
    %334 = vmatprep.subr.mxu0 0.0
    %335 = vmatpush1.msra.mxu0 0.0
    %336 = vmatprep.subr.mxu0 0.0
    %337 = vmatpush1.msra.mxu0 0.0
    %338 = vmatprep.subr.mxu0 0.0
    %339 = vmatpush1.msra.mxu0 0.0
    %340 = vmatprep.subr.mxu0 0.0
    %341 = vmatpush1.msra.mxu0 0.0
    %342 = vmatprep.subr.mxu0 0.0
    %343 = vmatpush1.msra.mxu0 0.0
    %344 = vmatprep.mubr.f32.mxu0 0.0
    %345 = vmatmul.mubr.f32.gmra.mrb[0].mxu0 %v278
    %v346 = vpop.f32.mrb[0].mxu0
    %v347 = vadd.f32 %v62, %v346
    %v348 = vpop.f32.mrb[0].mxu0
    %349 = vdwg.mxu0
    %s350 = scalar_lea.vmem %s6, 8
    %351 = vst [vmem:[%s350] sm:$0xff] %v347
    %s352 = scalar_lea.vmem %s1, 8
    %v353 = vld [vmem:[%s352] sm:$0xff]
    %s354 = sld [smem:[#allocation2 + $0x1]]
    %p355 = scmp.ne.s32.totalorder %s354, 0
    // Predicated region
    $region38: #{decoder_rnn2_forward.1} parent=1 // pred_check
      %p356 = pneg %p355
    $region39: #{decoder_rnn2_forward.1} parent=1 // pred_check_branch
      %358 = sbr.rel (%p356) target = $region41
    $region40: #{decoder_rnn2_forward.1} parent=1 // pred_region
      _
    $region41: #{decoder_rnn2_forward.1} parent=1 // pred_fallthru
      _
    %p359 = pneg %p355
    // Predicated region
    $region42: #{decoder_rnn2_forward.1} parent=1 // pred_check
      _
    $region43: #{decoder_rnn2_forward.1} parent=1 // pred_check_branch
      %361 = sbr.rel (%p355) target = $region45
    $region44: #{decoder_rnn2_forward.1} parent=1 // pred_region
      %362 = vmax.xlane.f32.xlu0 %v347
      %v363 = vpop.xlane.xlu0 %362
      %vm364 = vcmp.eq.f32.partialorder %v347, %v363
      %v365 = vsel %vm364, 1, 0
      %v366 = vcvt.s32.f32 %v365
      %367 = vmatprep.subr.mxu0 0.0
      %368 = vmatpush1.msra.mxu0 %v37
      %369 = vmatprep.subr.mxu0 0.0
      %370 = vmatpush1.msra.mxu0 %v38
      %371 = vmatprep.subr.mxu0 0.0
      %372 = vmatpush1.msra.mxu0 %v39
      %373 = vmatprep.subr.mxu0 0.0
      %374 = vmatpush1.msra.mxu0 %v40
      %375 = vmatprep.subr.mxu0 0.0
      %376 = vmatpush1.msra.mxu0 %v41
      %377 = vmatprep.subr.mxu0 0.0
      %378 = vmatpush1.msra.mxu0 %v42
      %379 = vmatprep.subr.mxu0 0.0
      %380 = vmatpush1.msra.mxu0 %v43
      %381 = vmatprep.subr.mxu0 0.0
      %382 = vmatpush1.msra.mxu0 %v44
      %383 = vmatprep.subr.mxu0 0.0
      %384 = vmatpush1.msra.mxu0 %v45
      %385 = vmatprep.subr.mxu0 0.0
      %386 = vmatpush1.msra.mxu0 %v46
      %387 = vmatprep.subr.mxu0 0.0
      %388 = vmatpush1.msra.mxu0 %v47
      %389 = vmatprep.subr.mxu0 0.0
      %390 = vmatpush1.msra.mxu0 %v48
      %391 = vmatprep.subr.mxu0 0.0
      %392 = vmatpush1.msra.mxu0 %v49
      %393 = vmatprep.subr.mxu0 0.0
      %394 = vmatpush1.msra.mxu0 %v50
      %395 = vmatprep.subr.mxu0 0.0
      %396 = vmatpush1.msra.mxu0 %v51
      %397 = vmatprep.subr.mxu0 0.0
      %398 = vmatpush1.msra.mxu0 %v52
      %399 = vmatprep.subr.mxu0 0.0
      %400 = vmatpush1.msra.mxu0 0.0
      %401 = vmatprep.subr.mxu0 0.0
      %402 = vmatpush1.msra.mxu0 0.0
      %403 = vmatprep.subr.mxu0 0.0
      %404 = vmatpush1.msra.mxu0 0.0
      %405 = vmatprep.subr.mxu0 0.0
      %406 = vmatpush1.msra.mxu0 0.0
      %407 = vmatprep.subr.mxu0 0.0
      %408 = vmatpush1.msra.mxu0 0.0
      %409 = vmatprep.subr.mxu0 0.0
      %410 = vmatpush1.msra.mxu0 0.0
      %411 = vmatprep.subr.mxu0 0.0
      %412 = vmatpush1.msra.mxu0 0.0
      %413 = vmatprep.subr.mxu0 0.0
      %414 = vmatpush1.msra.mxu0 0.0
      %415 = vmatprep.subr.mxu0 0.0
      %416 = vmatpush1.msra.mxu0 0.0
      %417 = vmatprep.subr.mxu0 0.0
      %418 = vmatpush1.msra.mxu0 0.0
      %419 = vmatprep.subr.mxu0 0.0
      %420 = vmatpush1.msra.mxu0 0.0
      %421 = vmatprep.subr.mxu0 0.0
      %422 = vmatpush1.msra.mxu0 0.0
      %423 = vmatprep.subr.mxu0 0.0
      %424 = vmatpush1.msra.mxu0 0.0
      %425 = vmatprep.subr.mxu0 0.0
      %426 = vmatpush1.msra.mxu0 0.0
      %427 = vmatprep.subr.mxu0 0.0
      %428 = vmatpush1.msra.mxu0 0.0
      %429 = vmatprep.subr.mxu0 0.0
      %430 = vmatpush1.msra.mxu0 0.0
      %431 = vmatprep.mubr.f32.mxu0 0.0
      %432 = vmatmul.mubr.f32.gmra.mrb[0].mxu0 %v366
      %v433 = vpop.f32.mrb[0].mxu0
      %v434 = vadd.f32 %v36, %v433
      %v435 = vpop.f32.mrb[0].mxu0
      %436 = vdwg.mxu0
    $region45: #{decoder_rnn2_forward.1} parent=1 // pred_fallthru
      %v437 = vphi %v353, %v434
    %v438 = vxor.u32 %v437, 2147483648
    %v439 = vmul.f32 %v438, 1.442695
    %v440 = vpow.pop %v439
    %v441 = vadd.f32 %v440, 1.0
    %v442 = vrcp.pop %v441
    %v443 = vmul.f32 1.0, %v442
    %v444 = vtanh.pop %v437
    %v445 = vmul.f32 %v443, %v268
    %447 = vrot.lane.b32.xlu0 %v444, 64
    %v448 = vpop.permute.xlu0 %447
    %v450 = vmul.f32 %v443, %v448
    %452 = vrot.lane.b32.xlu0 %v450, 32
    %v453 = vpop.permute.xlu0 %452
    %v455 = vadd.f32 %v445, %v453
    %v456 = vtanh.pop %v455
    %458 = vrot.lane.b32.xlu0 %v456, 64
    %v459 = vpop.permute.xlu0 %458
    %v461 = vmul.f32 %v443, %v459
    %463 = vrot.lane.b32.xlu0 %v461, 32
    %v464 = vpop.permute.xlu0 %463
    %v465 = vsel %vm92, %v464, 0
    %467 = vmatprep.subr.mxu0 0.0
    %468 = vmatpush1.msra.mxu0 %v53
    %469 = vmatprep.subr.mxu0 0.0
    %470 = vmatpush1.msra.mxu0 %v54
    %471 = vmatprep.subr.mxu0 0.0
    %472 = vmatpush1.msra.mxu0 %v55
    %473 = vmatprep.subr.mxu0 0.0
    %474 = vmatpush1.msra.mxu0 %v56
    %475 = vmatprep.subr.mxu0 0.0
    %476 = vmatpush1.msra.mxu0 0.0
    %477 = vmatprep.subr.mxu0 0.0
    %478 = vmatpush1.msra.mxu0 0.0
    %479 = vmatprep.subr.mxu0 0.0
    %480 = vmatpush1.msra.mxu0 0.0
    %481 = vmatprep.subr.mxu0 0.0
    %482 = vmatpush1.msra.mxu0 0.0
    %483 = vmatprep.subr.mxu0 0.0
    %484 = vmatpush1.msra.mxu0 0.0
    %485 = vmatprep.subr.mxu0 0.0
    %486 = vmatpush1.msra.mxu0 0.0
    %487 = vmatprep.subr.mxu0 0.0
    %488 = vmatpush1.msra.mxu0 0.0
    %489 = vmatprep.subr.mxu0 0.0
    %490 = vmatpush1.msra.mxu0 0.0
    %491 = vmatprep.subr.mxu0 0.0
    %492 = vmatpush1.msra.mxu0 0.0
    %493 = vmatprep.subr.mxu0 0.0
    %494 = vmatpush1.msra.mxu0 0.0
    %495 = vmatprep.subr.mxu0 0.0
    %496 = vmatpush1.msra.mxu0 0.0
    %497 = vmatprep.subr.mxu0 0.0
    %498 = vmatpush1.msra.mxu0 0.0
    %499 = vmatprep.subr.mxu0 0.0
    %500 = vmatpush1.msra.mxu0 0.0
    %501 = vmatprep.subr.mxu0 0.0
    %502 = vmatpush1.msra.mxu0 0.0
    %503 = vmatprep.subr.mxu0 0.0
    %504 = vmatpush1.msra.mxu0 0.0
    %505 = vmatprep.subr.mxu0 0.0
    %506 = vmatpush1.msra.mxu0 0.0
    %507 = vmatprep.subr.mxu0 0.0
    %508 = vmatpush1.msra.mxu0 0.0
    %509 = vmatprep.subr.mxu0 0.0
    %510 = vmatpush1.msra.mxu0 0.0
    %511 = vmatprep.subr.mxu0 0.0
    %512 = vmatpush1.msra.mxu0 0.0
    %513 = vmatprep.subr.mxu0 0.0
    %514 = vmatpush1.msra.mxu0 0.0
    %515 = vmatprep.subr.mxu0 0.0
    %516 = vmatpush1.msra.mxu0 0.0
    %517 = vmatprep.subr.mxu0 0.0
    %518 = vmatpush1.msra.mxu0 0.0
    %519 = vmatprep.subr.mxu0 0.0
    %520 = vmatpush1.msra.mxu0 0.0
    %521 = vmatprep.subr.mxu0 0.0
    %522 = vmatpush1.msra.mxu0 0.0
    %523 = vmatprep.subr.mxu0 0.0
    %524 = vmatpush1.msra.mxu0 0.0
    %525 = vmatprep.subr.mxu0 0.0
    %526 = vmatpush1.msra.mxu0 0.0
    %527 = vmatprep.subr.mxu0 0.0
    %528 = vmatpush1.msra.mxu0 0.0
    %529 = vmatprep.subr.mxu0 0.0
    %530 = vmatpush1.msra.mxu0 0.0
    %531 = vmatprep.mubr.f32.mxu0 0.0
    %532 = vmatmul.mubr.f32.gmra.mrb[0].mxu0 %v465
    %v533 = vpop.f32.mrb[0].mxu0
    %v534 = vadd.f32 %v62, %v533
    %v535 = vpop.f32.mrb[0].mxu0
    %536 = vdwg.mxu0
    %s537 = scalar_lea.vmem %s6, 16
    %538 = vst [vmem:[%s537] sm:$0xff] %v534
    %s539 = scalar_lea.vmem %s1, 16
    %v540 = vld [vmem:[%s539] sm:$0xff]
    %s541 = sld [smem:[#allocation2 + $0x2]]
    %p542 = scmp.ne.s32.totalorder %s541, 0
    // Predicated region
    $region46: #{decoder_rnn2_forward.1} parent=1 // pred_check
      %p543 = pneg %p542
    $region47: #{decoder_rnn2_forward.1} parent=1 // pred_check_branch
      %545 = sbr.rel (%p543) target = $region49
    $region48: #{decoder_rnn2_forward.1} parent=1 // pred_region
      _
    $region49: #{decoder_rnn2_forward.1} parent=1 // pred_fallthru
      _
    %p546 = pneg %p542
    // Predicated region
    $region50: #{decoder_rnn2_forward.1} parent=1 // pred_check
      _
    $region51: #{decoder_rnn2_forward.1} parent=1 // pred_check_branch
      %548 = sbr.rel (%p542) target = $region53
    $region52: #{decoder_rnn2_forward.1} parent=1 // pred_region
      %549 = vmax.xlane.f32.xlu0 %v534
      %v550 = vpop.xlane.xlu0 %549
      %vm551 = vcmp.eq.f32.partialorder %v534, %v550
      %v552 = vsel %vm551, 1, 0
      %v553 = vcvt.s32.f32 %v552
      %554 = vmatprep.subr.mxu0 0.0
      %555 = vmatpush1.msra.mxu0 %v37
      %556 = vmatprep.subr.mxu0 0.0
      %557 = vmatpush1.msra.mxu0 %v38
      %558 = vmatprep.subr.mxu0 0.0
      %559 = vmatpush1.msra.mxu0 %v39
      %560 = vmatprep.subr.mxu0 0.0
      %561 = vmatpush1.msra.mxu0 %v40
      %562 = vmatprep.subr.mxu0 0.0
      %563 = vmatpush1.msra.mxu0 %v41
      %564 = vmatprep.subr.mxu0 0.0
      %565 = vmatpush1.msra.mxu0 %v42
      %566 = vmatprep.subr.mxu0 0.0
      %567 = vmatpush1.msra.mxu0 %v43
      %568 = vmatprep.subr.mxu0 0.0
      %569 = vmatpush1.msra.mxu0 %v44
      %570 = vmatprep.subr.mxu0 0.0
      %571 = vmatpush1.msra.mxu0 %v45
      %572 = vmatprep.subr.mxu0 0.0
      %573 = vmatpush1.msra.mxu0 %v46
      %574 = vmatprep.subr.mxu0 0.0
      %575 = vmatpush1.msra.mxu0 %v47
      %576 = vmatprep.subr.mxu0 0.0
      %577 = vmatpush1.msra.mxu0 %v48
      %578 = vmatprep.subr.mxu0 0.0
      %579 = vmatpush1.msra.mxu0 %v49
      %580 = vmatprep.subr.mxu0 0.0
      %581 = vmatpush1.msra.mxu0 %v50
      %582 = vmatprep.subr.mxu0 0.0
      %583 = vmatpush1.msra.mxu0 %v51
      %584 = vmatprep.subr.mxu0 0.0
      %585 = vmatpush1.msra.mxu0 %v52
      %586 = vmatprep.subr.mxu0 0.0
      %587 = vmatpush1.msra.mxu0 0.0
      %588 = vmatprep.subr.mxu0 0.0
      %589 = vmatpush1.msra.mxu0 0.0
      %590 = vmatprep.subr.mxu0 0.0
      %591 = vmatpush1.msra.mxu0 0.0
      %592 = vmatprep.subr.mxu0 0.0
      %593 = vmatpush1.msra.mxu0 0.0
      %594 = vmatprep.subr.mxu0 0.0
      %595 = vmatpush1.msra.mxu0 0.0
      %596 = vmatprep.subr.mxu0 0.0
      %597 = vmatpush1.msra.mxu0 0.0
      %598 = vmatprep.subr.mxu0 0.0
      %599 = vmatpush1.msra.mxu0 0.0
      %600 = vmatprep.subr.mxu0 0.0
      %601 = vmatpush1.msra.mxu0 0.0
      %602 = vmatprep.subr.mxu0 0.0
      %603 = vmatpush1.msra.mxu0 0.0
      %604 = vmatprep.subr.mxu0 0.0
      %605 = vmatpush1.msra.mxu0 0.0
      %606 = vmatprep.subr.mxu0 0.0
      %607 = vmatpush1.msra.mxu0 0.0
      %608 = vmatprep.subr.mxu0 0.0
      %609 = vmatpush1.msra.mxu0 0.0
      %610 = vmatprep.subr.mxu0 0.0
      %611 = vmatpush1.msra.mxu0 0.0
      %612 = vmatprep.subr.mxu0 0.0
      %613 = vmatpush1.msra.mxu0 0.0
      %614 = vmatprep.subr.mxu0 0.0
      %615 = vmatpush1.msra.mxu0 0.0
      %616 = vmatprep.subr.mxu0 0.0
      %617 = vmatpush1.msra.mxu0 0.0
      %618 = vmatprep.mubr.f32.mxu0 0.0
      %619 = vmatmul.mubr.f32.gmra.mrb[0].mxu0 %v553
      %v620 = vpop.f32.mrb[0].mxu0
      %v621 = vadd.f32 %v36, %v620
      %v622 = vpop.f32.mrb[0].mxu0
      %623 = vdwg.mxu0
    $region53: #{decoder_rnn2_forward.1} parent=1 // pred_fallthru
      %v624 = vphi %v540, %v621
    %v625 = vxor.u32 %v624, 2147483648
    %v626 = vmul.f32 %v625, 1.442695
    %v627 = vpow.pop %v626
    %v628 = vadd.f32 %v627, 1.0
    %v629 = vrcp.pop %v628
    %v630 = vmul.f32 1.0, %v629
    %v631 = vtanh.pop %v624
    %v632 = vmul.f32 %v630, %v455
    %634 = vrot.lane.b32.xlu0 %v631, 64
    %v635 = vpop.permute.xlu0 %634
    %v637 = vmul.f32 %v630, %v635
    %639 = vrot.lane.b32.xlu0 %v637, 32
    %v640 = vpop.permute.xlu0 %639
    %v642 = vadd.f32 %v632, %v640
    %v643 = vtanh.pop %v642
    %645 = vrot.lane.b32.xlu0 %v643, 64
    %v646 = vpop.permute.xlu0 %645
    %v648 = vmul.f32 %v630, %v646
    %650 = vrot.lane.b32.xlu0 %v648, 32
    %v651 = vpop.permute.xlu0 %650
    %v652 = vsel %vm92, %v651, 0
    %654 = vmatprep.subr.mxu0 0.0
    %655 = vmatpush1.msra.mxu0 %v53
    %656 = vmatprep.subr.mxu0 0.0
    %657 = vmatpush1.msra.mxu0 %v54
    %658 = vmatprep.subr.mxu0 0.0
    %659 = vmatpush1.msra.mxu0 %v55
    %660 = vmatprep.subr.mxu0 0.0
    %661 = vmatpush1.msra.mxu0 %v56
    %662 = vmatprep.subr.mxu0 0.0
    %663 = vmatpush1.msra.mxu0 0.0
    %664 = vmatprep.subr.mxu0 0.0
    %665 = vmatpush1.msra.mxu0 0.0
    %666 = vmatprep.subr.mxu0 0.0
    %667 = vmatpush1.msra.mxu0 0.0
    %668 = vmatprep.subr.mxu0 0.0
    %669 = vmatpush1.msra.mxu0 0.0
    %670 = vmatprep.subr.mxu0 0.0
    %671 = vmatpush1.msra.mxu0 0.0
    %672 = vmatprep.subr.mxu0 0.0
    %673 = vmatpush1.msra.mxu0 0.0
    %674 = vmatprep.subr.mxu0 0.0
    %675 = vmatpush1.msra.mxu0 0.0
    %676 = vmatprep.subr.mxu0 0.0
    %677 = vmatpush1.msra.mxu0 0.0
    %678 = vmatprep.subr.mxu0 0.0
    %679 = vmatpush1.msra.mxu0 0.0
    %680 = vmatprep.subr.mxu0 0.0
    %681 = vmatpush1.msra.mxu0 0.0
    %682 = vmatprep.subr.mxu0 0.0
    %683 = vmatpush1.msra.mxu0 0.0
    %684 = vmatprep.subr.mxu0 0.0
    %685 = vmatpush1.msra.mxu0 0.0
    %686 = vmatprep.subr.mxu0 0.0
    %687 = vmatpush1.msra.mxu0 0.0
    %688 = vmatprep.subr.mxu0 0.0
    %689 = vmatpush1.msra.mxu0 0.0
    %690 = vmatprep.subr.mxu0 0.0
    %691 = vmatpush1.msra.mxu0 0.0
    %692 = vmatprep.subr.mxu0 0.0
    %693 = vmatpush1.msra.mxu0 0.0
    %694 = vmatprep.subr.mxu0 0.0
    %695 = vmatpush1.msra.mxu0 0.0
    %696 = vmatprep.subr.mxu0 0.0
    %697 = vmatpush1.msra.mxu0 0.0
    %698 = vmatprep.subr.mxu0 0.0
    %699 = vmatpush1.msra.mxu0 0.0
    %700 = vmatprep.subr.mxu0 0.0
    %701 = vmatpush1.msra.mxu0 0.0
    %702 = vmatprep.subr.mxu0 0.0
    %703 = vmatpush1.msra.mxu0 0.0
    %704 = vmatprep.subr.mxu0 0.0
    %705 = vmatpush1.msra.mxu0 0.0
    %706 = vmatprep.subr.mxu0 0.0
    %707 = vmatpush1.msra.mxu0 0.0
    %708 = vmatprep.subr.mxu0 0.0
    %709 = vmatpush1.msra.mxu0 0.0
    %710 = vmatprep.subr.mxu0 0.0
    %711 = vmatpush1.msra.mxu0 0.0
    %712 = vmatprep.subr.mxu0 0.0
    %713 = vmatpush1.msra.mxu0 0.0
    %714 = vmatprep.subr.mxu0 0.0
    %715 = vmatpush1.msra.mxu0 0.0
    %716 = vmatprep.subr.mxu0 0.0
    %717 = vmatpush1.msra.mxu0 0.0
    %718 = vmatprep.mubr.f32.mxu0 0.0
    %719 = vmatmul.mubr.f32.gmra.mrb[0].mxu0 %v652
    %v720 = vpop.f32.mrb[0].mxu0
    %v721 = vadd.f32 %v62, %v720
    %v722 = vpop.f32.mrb[0].mxu0
    %723 = vdwg.mxu0
    %s724 = scalar_lea.vmem %s6, 24
    %725 = vst [vmem:[%s724] sm:$0xff] %v721
    %s726 = scalar_lea.vmem %s1, 24
    %v727 = vld [vmem:[%s726] sm:$0xff]
    %s728 = sld [smem:[#allocation2 + $0x3]]
    %p729 = scmp.ne.s32.totalorder %s728, 0
    // Predicated region
    $region54: #{decoder_rnn2_forward.1} parent=1 // pred_check
      %p730 = pneg %p729
    $region55: #{decoder_rnn2_forward.1} parent=1 // pred_check_branch
      %732 = sbr.rel (%p730) target = $region57
    $region56: #{decoder_rnn2_forward.1} parent=1 // pred_region
      _
    $region57: #{decoder_rnn2_forward.1} parent=1 // pred_fallthru
      _
    %p733 = pneg %p729
    // Predicated region
    $region58: #{decoder_rnn2_forward.1} parent=1 // pred_check
      _
    $region59: #{decoder_rnn2_forward.1} parent=1 // pred_check_branch
      %735 = sbr.rel (%p729) target = $region61
    $region60: #{decoder_rnn2_forward.1} parent=1 // pred_region
      %736 = vmax.xlane.f32.xlu0 %v721
      %v737 = vpop.xlane.xlu0 %736
      %vm738 = vcmp.eq.f32.partialorder %v721, %v737
      %v739 = vsel %vm738, 1, 0
      %v740 = vcvt.s32.f32 %v739
      %741 = vmatprep.subr.mxu0 0.0
      %742 = vmatpush1.msra.mxu0 %v37
      %743 = vmatprep.subr.mxu0 0.0
      %744 = vmatpush1.msra.mxu0 %v38
      %745 = vmatprep.subr.mxu0 0.0
      %746 = vmatpush1.msra.mxu0 %v39
      %747 = vmatprep.subr.mxu0 0.0
      %748 = vmatpush1.msra.mxu0 %v40
      %749 = vmatprep.subr.mxu0 0.0
      %750 = vmatpush1.msra.mxu0 %v41
      %751 = vmatprep.subr.mxu0 0.0
      %752 = vmatpush1.msra.mxu0 %v42
      %753 = vmatprep.subr.mxu0 0.0
      %754 = vmatpush1.msra.mxu0 %v43
      %755 = vmatprep.subr.mxu0 0.0
      %756 = vmatpush1.msra.mxu0 %v44
      %757 = vmatprep.subr.mxu0 0.0
      %758 = vmatpush1.msra.mxu0 %v45
      %759 = vmatprep.subr.mxu0 0.0
      %760 = vmatpush1.msra.mxu0 %v46
      %761 = vmatprep.subr.mxu0 0.0
      %762 = vmatpush1.msra.mxu0 %v47
      %763 = vmatprep.subr.mxu0 0.0
      %764 = vmatpush1.msra.mxu0 %v48
      %765 = vmatprep.subr.mxu0 0.0
      %766 = vmatpush1.msra.mxu0 %v49
      %767 = vmatprep.subr.mxu0 0.0
      %768 = vmatpush1.msra.mxu0 %v50
      %769 = vmatprep.subr.mxu0 0.0
      %770 = vmatpush1.msra.mxu0 %v51
      %771 = vmatprep.subr.mxu0 0.0
      %772 = vmatpush1.msra.mxu0 %v52
      %773 = vmatprep.subr.mxu0 0.0
      %774 = vmatpush1.msra.mxu0 0.0
      %775 = vmatprep.subr.mxu0 0.0
      %776 = vmatpush1.msra.mxu0 0.0
      %777 = vmatprep.subr.mxu0 0.0
      %778 = vmatpush1.msra.mxu0 0.0
      %779 = vmatprep.subr.mxu0 0.0
      %780 = vmatpush1.msra.mxu0 0.0
      %781 = vmatprep.subr.mxu0 0.0
      %782 = vmatpush1.msra.mxu0 0.0
      %783 = vmatprep.subr.mxu0 0.0
      %784 = vmatpush1.msra.mxu0 0.0
      %785 = vmatprep.subr.mxu0 0.0
      %786 = vmatpush1.msra.mxu0 0.0
      %787 = vmatprep.subr.mxu0 0.0
      %788 = vmatpush1.msra.mxu0 0.0
      %789 = vmatprep.subr.mxu0 0.0
      %790 = vmatpush1.msra.mxu0 0.0
      %791 = vmatprep.subr.mxu0 0.0
      %792 = vmatpush1.msra.mxu0 0.0
      %793 = vmatprep.subr.mxu0 0.0
      %794 = vmatpush1.msra.mxu0 0.0
      %795 = vmatprep.subr.mxu0 0.0
      %796 = vmatpush1.msra.mxu0 0.0
      %797 = vmatprep.subr.mxu0 0.0
      %798 = vmatpush1.msra.mxu0 0.0
      %799 = vmatprep.subr.mxu0 0.0
      %800 = vmatpush1.msra.mxu0 0.0
      %801 = vmatprep.subr.mxu0 0.0
      %802 = vmatpush1.msra.mxu0 0.0
      %803 = vmatprep.subr.mxu0 0.0
      %804 = vmatpush1.msra.mxu0 0.0
      %805 = vmatprep.mubr.f32.mxu0 0.0
      %806 = vmatmul.mubr.f32.gmra.mrb[0].mxu0 %v740
      %v807 = vpop.f32.mrb[0].mxu0
      %v808 = vadd.f32 %v36, %v807
      %v809 = vpop.f32.mrb[0].mxu0
      %810 = vdwg.mxu0
    $region61: #{decoder_rnn2_forward.1} parent=1 // pred_fallthru
      %v811 = vphi %v727, %v808
    %v812 = vxor.u32 %v811, 2147483648
    %v813 = vmul.f32 %v812, 1.442695
    %v814 = vpow.pop %v813
    %v815 = vadd.f32 %v814, 1.0
    %v816 = vrcp.pop %v815
    %v817 = vmul.f32 1.0, %v816
    %v818 = vtanh.pop %v811
    %v819 = vmul.f32 %v817, %v642
    %821 = vrot.lane.b32.xlu0 %v818, 64
    %v822 = vpop.permute.xlu0 %821
    %v824 = vmul.f32 %v817, %v822
    %826 = vrot.lane.b32.xlu0 %v824, 32
    %v827 = vpop.permute.xlu0 %826
    %v829 = vadd.f32 %v819, %v827
    %v830 = vtanh.pop %v829
    %832 = vrot.lane.b32.xlu0 %v830, 64
    %v833 = vpop.permute.xlu0 %832
    %v835 = vmul.f32 %v817, %v833
    %837 = vrot.lane.b32.xlu0 %v835, 32
    %v838 = vpop.permute.xlu0 %837
    %v839 = vsel %vm92, %v838, 0
    %841 = vmatprep.subr.mxu0 0.0
    %842 = vmatpush1.msra.mxu0 %v53
    %843 = vmatprep.subr.mxu0 0.0
    %844 = vmatpush1.msra.mxu0 %v54
    %845 = vmatprep.subr.mxu0 0.0
    %846 = vmatpush1.msra.mxu0 %v55
    %847 = vmatprep.subr.mxu0 0.0
    %848 = vmatpush1.msra.mxu0 %v56
    %849 = vmatprep.subr.mxu0 0.0
    %850 = vmatpush1.msra.mxu0 0.0
    %851 = vmatprep.subr.mxu0 0.0
    %852 = vmatpush1.msra.mxu0 0.0
    %853 = vmatprep.subr.mxu0 0.0
    %854 = vmatpush1.msra.mxu0 0.0
    %855 = vmatprep.subr.mxu0 0.0
    %856 = vmatpush1.msra.mxu0 0.0
    %857 = vmatprep.subr.mxu0 0.0
    %858 = vmatpush1.msra.mxu0 0.0
    %859 = vmatprep.subr.mxu0 0.0
    %860 = vmatpush1.msra.mxu0 0.0
    %861 = vmatprep.subr.mxu0 0.0
    %862 = vmatpush1.msra.mxu0 0.0
    %863 = vmatprep.subr.mxu0 0.0
    %864 = vmatpush1.msra.mxu0 0.0
    %865 = vmatprep.subr.mxu0 0.0
    %866 = vmatpush1.msra.mxu0 0.0
    %867 = vmatprep.subr.mxu0 0.0
    %868 = vmatpush1.msra.mxu0 0.0
    %869 = vmatprep.subr.mxu0 0.0
    %870 = vmatpush1.msra.mxu0 0.0
    %871 = vmatprep.subr.mxu0 0.0
    %872 = vmatpush1.msra.mxu0 0.0
    %873 = vmatprep.subr.mxu0 0.0
    %874 = vmatpush1.msra.mxu0 0.0
    %875 = vmatprep.subr.mxu0 0.0
    %876 = vmatpush1.msra.mxu0 0.0
    %877 = vmatprep.subr.mxu0 0.0
    %878 = vmatpush1.msra.mxu0 0.0
    %879 = vmatprep.subr.mxu0 0.0
    %880 = vmatpush1.msra.mxu0 0.0
    %881 = vmatprep.subr.mxu0 0.0
    %882 = vmatpush1.msra.mxu0 0.0
    %883 = vmatprep.subr.mxu0 0.0
    %884 = vmatpush1.msra.mxu0 0.0
    %885 = vmatprep.subr.mxu0 0.0
    %886 = vmatpush1.msra.mxu0 0.0
    %887 = vmatprep.subr.mxu0 0.0
    %888 = vmatpush1.msra.mxu0 0.0
    %889 = vmatprep.subr.mxu0 0.0
    %890 = vmatpush1.msra.mxu0 0.0
    %891 = vmatprep.subr.mxu0 0.0
    %892 = vmatpush1.msra.mxu0 0.0
    %893 = vmatprep.subr.mxu0 0.0
    %894 = vmatpush1.msra.mxu0 0.0
    %895 = vmatprep.subr.mxu0 0.0
    %896 = vmatpush1.msra.mxu0 0.0
    %897 = vmatprep.subr.mxu0 0.0
    %898 = vmatpush1.msra.mxu0 0.0
    %899 = vmatprep.subr.mxu0 0.0
    %900 = vmatpush1.msra.mxu0 0.0
    %901 = vmatprep.subr.mxu0 0.0
    %902 = vmatpush1.msra.mxu0 0.0
    %903 = vmatprep.subr.mxu0 0.0
    %904 = vmatpush1.msra.mxu0 0.0
    %905 = vmatprep.mubr.f32.mxu0 0.0
    %906 = vmatmul.mubr.f32.gmra.mrb[0].mxu0 %v839
    %v907 = vpop.f32.mrb[0].mxu0
    %v908 = vadd.f32 %v62, %v907
    %v909 = vpop.f32.mrb[0].mxu0
    %910 = vdwg.mxu0
    %s911 = scalar_lea.vmem %s6, 32
    %912 = vst [vmem:[%s911] sm:$0xff] %v908
    %s913 = scalar_lea.vmem %s1, 32
    %v914 = vld [vmem:[%s913] sm:$0xff]
    %s915 = sld [smem:[#allocation2 + $0x4]]
    %p916 = scmp.ne.s32.totalorder %s915, 0
    // Predicated region
    $region62: #{decoder_rnn2_forward.1} parent=1 // pred_check
      %p917 = pneg %p916
    $region63: #{decoder_rnn2_forward.1} parent=1 // pred_check_branch
      %919 = sbr.rel (%p917) target = $region65
    $region64: #{decoder_rnn2_forward.1} parent=1 // pred_region
      _
    $region65: #{decoder_rnn2_forward.1} parent=1 // pred_fallthru
      _
    %p920 = pneg %p916
    // Predicated region
    $region66: #{decoder_rnn2_forward.1} parent=1 // pred_check
      _
    $region67: #{decoder_rnn2_forward.1} parent=1 // pred_check_branch
      %922 = sbr.rel (%p916) target = $region69
    $region68: #{decoder_rnn2_forward.1} parent=1 // pred_region
      %923 = vmax.xlane.f32.xlu0 %v908
      %v924 = vpop.xlane.xlu0 %923
      %vm925 = vcmp.eq.f32.partialorder %v908, %v924
      %v926 = vsel %vm925, 1, 0
      %v927 = vcvt.s32.f32 %v926
      %928 = vmatprep.subr.mxu0 0.0
      %929 = vmatpush1.msra.mxu0 %v37
      %930 = vmatprep.subr.mxu0 0.0
      %931 = vmatpush1.msra.mxu0 %v38
      %932 = vmatprep.subr.mxu0 0.0
      %933 = vmatpush1.msra.mxu0 %v39
      %934 = vmatprep.subr.mxu0 0.0
      %935 = vmatpush1.msra.mxu0 %v40
      %936 = vmatprep.subr.mxu0 0.0
      %937 = vmatpush1.msra.mxu0 %v41
      %938 = vmatprep.subr.mxu0 0.0
      %939 = vmatpush1.msra.mxu0 %v42
      %940 = vmatprep.subr.mxu0 0.0
      %941 = vmatpush1.msra.mxu0 %v43
      %942 = vmatprep.subr.mxu0 0.0
      %943 = vmatpush1.msra.mxu0 %v44
      %944 = vmatprep.subr.mxu0 0.0
      %945 = vmatpush1.msra.mxu0 %v45
      %946 = vmatprep.subr.mxu0 0.0
      %947 = vmatpush1.msra.mxu0 %v46
      %948 = vmatprep.subr.mxu0 0.0
      %949 = vmatpush1.msra.mxu0 %v47
      %950 = vmatprep.subr.mxu0 0.0
      %951 = vmatpush1.msra.mxu0 %v48
      %952 = vmatprep.subr.mxu0 0.0
      %953 = vmatpush1.msra.mxu0 %v49
      %954 = vmatprep.subr.mxu0 0.0
      %955 = vmatpush1.msra.mxu0 %v50
      %956 = vmatprep.subr.mxu0 0.0
      %957 = vmatpush1.msra.mxu0 %v51
      %958 = vmatprep.subr.mxu0 0.0
      %959 = vmatpush1.msra.mxu0 %v52
      %960 = vmatprep.subr.mxu0 0.0
      %961 = vmatpush1.msra.mxu0 0.0
      %962 = vmatprep.subr.mxu0 0.0
      %963 = vmatpush1.msra.mxu0 0.0
      %964 = vmatprep.subr.mxu0 0.0
      %965 = vmatpush1.msra.mxu0 0.0
      %966 = vmatprep.subr.mxu0 0.0
      %967 = vmatpush1.msra.mxu0 0.0
      %968 = vmatprep.subr.mxu0 0.0
      %969 = vmatpush1.msra.mxu0 0.0
      %970 = vmatprep.subr.mxu0 0.0
      %971 = vmatpush1.msra.mxu0 0.0
      %972 = vmatprep.subr.mxu0 0.0
      %973 = vmatpush1.msra.mxu0 0.0
      %974 = vmatprep.subr.mxu0 0.0
      %975 = vmatpush1.msra.mxu0 0.0
      %976 = vmatprep.subr.mxu0 0.0
      %977 = vmatpush1.msra.mxu0 0.0
      %978 = vmatprep.subr.mxu0 0.0
      %979 = vmatpush1.msra.mxu0 0.0
      %980 = vmatprep.subr.mxu0 0.0
      %981 = vmatpush1.msra.mxu0 0.0
      %982 = vmatprep.subr.mxu0 0.0
      %983 = vmatpush1.msra.mxu0 0.0
      %984 = vmatprep.subr.mxu0 0.0
      %985 = vmatpush1.msra.mxu0 0.0
      %986 = vmatprep.subr.mxu0 0.0
      %987 = vmatpush1.msra.mxu0 0.0
      %988 = vmatprep.subr.mxu0 0.0
      %989 = vmatpush1.msra.mxu0 0.0
      %990 = vmatprep.subr.mxu0 0.0
      %991 = vmatpush1.msra.mxu0 0.0
      %992 = vmatprep.mubr.f32.mxu0 0.0
      %993 = vmatmul.mubr.f32.gmra.mrb[0].mxu0 %v927
      %v994 = vpop.f32.mrb[0].mxu0
      %v995 = vadd.f32 %v36, %v994
      %v996 = vpop.f32.mrb[0].mxu0
      %997 = vdwg.mxu0
    $region69: #{decoder_rnn2_forward.1} parent=1 // pred_fallthru
      %v998 = vphi %v914, %v995
    %v999 = vxor.u32 %v998, 2147483648
    %v1000 = vmul.f32 %v999, 1.442695
    %v1001 = vpow.pop %v1000
    %v1002 = vadd.f32 %v1001, 1.0
    %v1003 = vrcp.pop %v1002
    %v1004 = vmul.f32 1.0, %v1003
    %v1005 = vtanh.pop %v998
    %v1006 = vmul.f32 %v1004, %v829
    %1008 = vrot.lane.b32.xlu0 %v1005, 64
    %v1009 = vpop.permute.xlu0 %1008
    %v1011 = vmul.f32 %v1004, %v1009
    %1013 = vrot.lane.b32.xlu0 %v1011, 32
    %v1014 = vpop.permute.xlu0 %1013
    %v1016 = vadd.f32 %v1006, %v1014
    %v1017 = vtanh.pop %v1016
    %1019 = vrot.lane.b32.xlu0 %v1017, 64
    %v1020 = vpop.permute.xlu0 %1019
    %v1022 = vmul.f32 %v1004, %v1020
    %1024 = vrot.lane.b32.xlu0 %v1022, 32
    %v1025 = vpop.permute.xlu0 %1024
    %v1026 = vsel %vm92, %v1025, 0
    %1028 = vmatprep.subr.mxu0 0.0
    %1029 = vmatpush1.msra.mxu0 %v53
    %1030 = vmatprep.subr.mxu0 0.0
    %1031 = vmatpush1.msra.mxu0 %v54
    %1032 = vmatprep.subr.mxu0 0.0
    %1033 = vmatpush1.msra.mxu0 %v55
    %1034 = vmatprep.subr.mxu0 0.0
    %1035 = vmatpush1.msra.mxu0 %v56
    %1036 = vmatprep.subr.mxu0 0.0
    %1037 = vmatpush1.msra.mxu0 0.0
    %1038 = vmatprep.subr.mxu0 0.0
    %1039 = vmatpush1.msra.mxu0 0.0
    %1040 = vmatprep.subr.mxu0 0.0
    %1041 = vmatpush1.msra.mxu0 0.0
    %1042 = vmatprep.subr.mxu0 0.0
    %1043 = vmatpush1.msra.mxu0 0.0
    %1044 = vmatprep.subr.mxu0 0.0
    %1045 = vmatpush1.msra.mxu0 0.0
    %1046 = vmatprep.subr.mxu0 0.0
    %1047 = vmatpush1.msra.mxu0 0.0
    %1048 = vmatprep.subr.mxu0 0.0
    %1049 = vmatpush1.msra.mxu0 0.0
    %1050 = vmatprep.subr.mxu0 0.0
    %1051 = vmatpush1.msra.mxu0 0.0
    %1052 = vmatprep.subr.mxu0 0.0
    %1053 = vmatpush1.msra.mxu0 0.0
    %1054 = vmatprep.subr.mxu0 0.0
    %1055 = vmatpush1.msra.mxu0 0.0
    %1056 = vmatprep.subr.mxu0 0.0
    %1057 = vmatpush1.msra.mxu0 0.0
    %1058 = vmatprep.subr.mxu0 0.0
    %1059 = vmatpush1.msra.mxu0 0.0
    %1060 = vmatprep.subr.mxu0 0.0
    %1061 = vmatpush1.msra.mxu0 0.0
    %1062 = vmatprep.subr.mxu0 0.0
    %1063 = vmatpush1.msra.mxu0 0.0
    %1064 = vmatprep.subr.mxu0 0.0
    %1065 = vmatpush1.msra.mxu0 0.0
    %1066 = vmatprep.subr.mxu0 0.0
    %1067 = vmatpush1.msra.mxu0 0.0
    %1068 = vmatprep.subr.mxu0 0.0
    %1069 = vmatpush1.msra.mxu0 0.0
    %1070 = vmatprep.subr.mxu0 0.0
    %1071 = vmatpush1.msra.mxu0 0.0
    %1072 = vmatprep.subr.mxu0 0.0
    %1073 = vmatpush1.msra.mxu0 0.0
    %1074 = vmatprep.subr.mxu0 0.0
    %1075 = vmatpush1.msra.mxu0 0.0
    %1076 = vmatprep.subr.mxu0 0.0
    %1077 = vmatpush1.msra.mxu0 0.0
    %1078 = vmatprep.subr.mxu0 0.0
    %1079 = vmatpush1.msra.mxu0 0.0
    %1080 = vmatprep.subr.mxu0 0.0
    %1081 = vmatpush1.msra.mxu0 0.0
    %1082 = vmatprep.subr.mxu0 0.0
    %1083 = vmatpush1.msra.mxu0 0.0
    %1084 = vmatprep.subr.mxu0 0.0
    %1085 = vmatpush1.msra.mxu0 0.0
    %1086 = vmatprep.subr.mxu0 0.0
    %1087 = vmatpush1.msra.mxu0 0.0
    %1088 = vmatprep.subr.mxu0 0.0
    %1089 = vmatpush1.msra.mxu0 0.0
    %1090 = vmatprep.subr.mxu0 0.0
    %1091 = vmatpush1.msra.mxu0 0.0
    %1092 = vmatprep.mubr.f32.mxu0 0.0
    %1093 = vmatmul.mubr.f32.gmra.mrb[0].mxu0 %v1026
    %v1094 = vpop.f32.mrb[0].mxu0
    %v1095 = vadd.f32 %v62, %v1094
    %v1096 = vpop.f32.mrb[0].mxu0
    %1097 = vdwg.mxu0
    %s1098 = scalar_lea.vmem %s6, 40
    %1099 = vst [vmem:[%s1098] sm:$0xff] %v1095
    %s1100 = scalar_lea.vmem %s1, 40
    %v1101 = vld [vmem:[%s1100] sm:$0xff]
    %s1102 = sld [smem:[#allocation2 + $0x5]]
    %p1103 = scmp.ne.s32.totalorder %s1102, 0
    // Predicated region
    $region70: #{decoder_rnn2_forward.1} parent=1 // pred_check
      %p1104 = pneg %p1103
    $region71: #{decoder_rnn2_forward.1} parent=1 // pred_check_branch
      %1106 = sbr.rel (%p1104) target = $region73
    $region72: #{decoder_rnn2_forward.1} parent=1 // pred_region
      _
    $region73: #{decoder_rnn2_forward.1} parent=1 // pred_fallthru
      _
    %p1107 = pneg %p1103
    // Predicated region
    $region74: #{decoder_rnn2_forward.1} parent=1 // pred_check
      _
    $region75: #{decoder_rnn2_forward.1} parent=1 // pred_check_branch
      %1109 = sbr.rel (%p1103) target = $region77
    $region76: #{decoder_rnn2_forward.1} parent=1 // pred_region
      %1110 = vmax.xlane.f32.xlu0 %v1095
      %v1111 = vpop.xlane.xlu0 %1110
      %vm1112 = vcmp.eq.f32.partialorder %v1095, %v1111
      %v1113 = vsel %vm1112, 1, 0
      %v1114 = vcvt.s32.f32 %v1113
      %1115 = vmatprep.subr.mxu0 0.0
      %1116 = vmatpush1.msra.mxu0 %v37
      %1117 = vmatprep.subr.mxu0 0.0
      %1118 = vmatpush1.msra.mxu0 %v38
      %1119 = vmatprep.subr.mxu0 0.0
      %1120 = vmatpush1.msra.mxu0 %v39
      %1121 = vmatprep.subr.mxu0 0.0
      %1122 = vmatpush1.msra.mxu0 %v40
      %1123 = vmatprep.subr.mxu0 0.0
      %1124 = vmatpush1.msra.mxu0 %v41
      %1125 = vmatprep.subr.mxu0 0.0
      %1126 = vmatpush1.msra.mxu0 %v42
      %1127 = vmatprep.subr.mxu0 0.0
      %1128 = vmatpush1.msra.mxu0 %v43
      %1129 = vmatprep.subr.mxu0 0.0
      %1130 = vmatpush1.msra.mxu0 %v44
      %1131 = vmatprep.subr.mxu0 0.0
      %1132 = vmatpush1.msra.mxu0 %v45
      %1133 = vmatprep.subr.mxu0 0.0
      %1134 = vmatpush1.msra.mxu0 %v46
      %1135 = vmatprep.subr.mxu0 0.0
      %1136 = vmatpush1.msra.mxu0 %v47
      %1137 = vmatprep.subr.mxu0 0.0
      %1138 = vmatpush1.msra.mxu0 %v48
      %1139 = vmatprep.subr.mxu0 0.0
      %1140 = vmatpush1.msra.mxu0 %v49
      %1141 = vmatprep.subr.mxu0 0.0
      %1142 = vmatpush1.msra.mxu0 %v50
      %1143 = vmatprep.subr.mxu0 0.0
      %1144 = vmatpush1.msra.mxu0 %v51
      %1145 = vmatprep.subr.mxu0 0.0
      %1146 = vmatpush1.msra.mxu0 %v52
      %1147 = vmatprep.subr.mxu0 0.0
      %1148 = vmatpush1.msra.mxu0 0.0
      %1149 = vmatprep.subr.mxu0 0.0
      %1150 = vmatpush1.msra.mxu0 0.0
      %1151 = vmatprep.subr.mxu0 0.0
      %1152 = vmatpush1.msra.mxu0 0.0
      %1153 = vmatprep.subr.mxu0 0.0
      %1154 = vmatpush1.msra.mxu0 0.0
      %1155 = vmatprep.subr.mxu0 0.0
      %1156 = vmatpush1.msra.mxu0 0.0
      %1157 = vmatprep.subr.mxu0 0.0
      %1158 = vmatpush1.msra.mxu0 0.0
      %1159 = vmatprep.subr.mxu0 0.0
      %1160 = vmatpush1.msra.mxu0 0.0
      %1161 = vmatprep.subr.mxu0 0.0
      %1162 = vmatpush1.msra.mxu0 0.0
      %1163 = vmatprep.subr.mxu0 0.0
      %1164 = vmatpush1.msra.mxu0 0.0
      %1165 = vmatprep.subr.mxu0 0.0
      %1166 = vmatpush1.msra.mxu0 0.0
      %1167 = vmatprep.subr.mxu0 0.0
      %1168 = vmatpush1.msra.mxu0 0.0
      %1169 = vmatprep.subr.mxu0 0.0
      %1170 = vmatpush1.msra.mxu0 0.0
      %1171 = vmatprep.subr.mxu0 0.0
      %1172 = vmatpush1.msra.mxu0 0.0
      %1173 = vmatprep.subr.mxu0 0.0
      %1174 = vmatpush1.msra.mxu0 0.0
      %1175 = vmatprep.subr.mxu0 0.0
      %1176 = vmatpush1.msra.mxu0 0.0
      %1177 = vmatprep.subr.mxu0 0.0
      %1178 = vmatpush1.msra.mxu0 0.0
      %1179 = vmatprep.mubr.f32.mxu0 0.0
      %1180 = vmatmul.mubr.f32.gmra.mrb[0].mxu0 %v1114
      %v1181 = vpop.f32.mrb[0].mxu0
      %v1182 = vadd.f32 %v36, %v1181
      %v1183 = vpop.f32.mrb[0].mxu0
      %1184 = vdwg.mxu0
    $region77: #{decoder_rnn2_forward.1} parent=1 // pred_fallthru
      %v1185 = vphi %v1101, %v1182
    %v1186 = vxor.u32 %v1185, 2147483648
    %v1187 = vmul.f32 %v1186, 1.442695
    %v1188 = vpow.pop %v1187
    %v1189 = vadd.f32 %v1188, 1.0
    %v1190 = vrcp.pop %v1189
    %v1191 = vmul.f32 1.0, %v1190
    %v1192 = vtanh.pop %v1185
    %v1193 = vmul.f32 %v1191, %v1016
    %1195 = vrot.lane.b32.xlu0 %v1192, 64
    %v1196 = vpop.permute.xlu0 %1195
    %v1198 = vmul.f32 %v1191, %v1196
    %1200 = vrot.lane.b32.xlu0 %v1198, 32
    %v1201 = vpop.permute.xlu0 %1200
    %v1203 = vadd.f32 %v1193, %v1201
    %v1204 = vtanh.pop %v1203
    %1206 = vrot.lane.b32.xlu0 %v1204, 64
    %v1207 = vpop.permute.xlu0 %1206
    %v1209 = vmul.f32 %v1191, %v1207
    %1211 = vrot.lane.b32.xlu0 %v1209, 32
    %v1212 = vpop.permute.xlu0 %1211
    %v1213 = vsel %vm92, %v1212, 0
    %1215 = vmatprep.subr.mxu0 0.0
    %1216 = vmatpush1.msra.mxu0 %v53
    %1217 = vmatprep.subr.mxu0 0.0
    %1218 = vmatpush1.msra.mxu0 %v54
    %1219 = vmatprep.subr.mxu0 0.0
    %1220 = vmatpush1.msra.mxu0 %v55
    %1221 = vmatprep.subr.mxu0 0.0
    %1222 = vmatpush1.msra.mxu0 %v56
    %1223 = vmatprep.subr.mxu0 0.0
    %1224 = vmatpush1.msra.mxu0 0.0
    %1225 = vmatprep.subr.mxu0 0.0
    %1226 = vmatpush1.msra.mxu0 0.0
    %1227 = vmatprep.subr.mxu0 0.0
    %1228 = vmatpush1.msra.mxu0 0.0
    %1229 = vmatprep.subr.mxu0 0.0
    %1230 = vmatpush1.msra.mxu0 0.0
    %1231 = vmatprep.subr.mxu0 0.0
    %1232 = vmatpush1.msra.mxu0 0.0
    %1233 = vmatprep.subr.mxu0 0.0
    %1234 = vmatpush1.msra.mxu0 0.0
    %1235 = vmatprep.subr.mxu0 0.0
    %1236 = vmatpush1.msra.mxu0 0.0
    %1237 = vmatprep.subr.mxu0 0.0
    %1238 = vmatpush1.msra.mxu0 0.0
    %1239 = vmatprep.subr.mxu0 0.0
    %1240 = vmatpush1.msra.mxu0 0.0
    %1241 = vmatprep.subr.mxu0 0.0
    %1242 = vmatpush1.msra.mxu0 0.0
    %1243 = vmatprep.subr.mxu0 0.0
    %1244 = vmatpush1.msra.mxu0 0.0
    %1245 = vmatprep.subr.mxu0 0.0
    %1246 = vmatpush1.msra.mxu0 0.0
    %1247 = vmatprep.subr.mxu0 0.0
    %1248 = vmatpush1.msra.mxu0 0.0
    %1249 = vmatprep.subr.mxu0 0.0
    %1250 = vmatpush1.msra.mxu0 0.0
    %1251 = vmatprep.subr.mxu0 0.0
    %1252 = vmatpush1.msra.mxu0 0.0
    %1253 = vmatprep.subr.mxu0 0.0
    %1254 = vmatpush1.msra.mxu0 0.0
    %1255 = vmatprep.subr.mxu0 0.0
    %1256 = vmatpush1.msra.mxu0 0.0
    %1257 = vmatprep.subr.mxu0 0.0
    %1258 = vmatpush1.msra.mxu0 0.0
    %1259 = vmatprep.subr.mxu0 0.0
    %1260 = vmatpush1.msra.mxu0 0.0
    %1261 = vmatprep.subr.mxu0 0.0
    %1262 = vmatpush1.msra.mxu0 0.0
    %1263 = vmatprep.subr.mxu0 0.0
    %1264 = vmatpush1.msra.mxu0 0.0
    %1265 = vmatprep.subr.mxu0 0.0
    %1266 = vmatpush1.msra.mxu0 0.0
    %1267 = vmatprep.subr.mxu0 0.0
    %1268 = vmatpush1.msra.mxu0 0.0
    %1269 = vmatprep.subr.mxu0 0.0
    %1270 = vmatpush1.msra.mxu0 0.0
    %1271 = vmatprep.subr.mxu0 0.0
    %1272 = vmatpush1.msra.mxu0 0.0
    %1273 = vmatprep.subr.mxu0 0.0
    %1274 = vmatpush1.msra.mxu0 0.0
    %1275 = vmatprep.subr.mxu0 0.0
    %1276 = vmatpush1.msra.mxu0 0.0
    %1277 = vmatprep.subr.mxu0 0.0
    %1278 = vmatpush1.msra.mxu0 0.0
    %1279 = vmatprep.mubr.f32.mxu0 0.0
    %1280 = vmatmul.mubr.f32.gmra.mrb[0].mxu0 %v1213
    %v1281 = vpop.f32.mrb[0].mxu0
    %v1282 = vadd.f32 %v62, %v1281
    %v1283 = vpop.f32.mrb[0].mxu0
    %1284 = vdwg.mxu0
    %s1285 = scalar_lea.vmem %s6, 48
    %1286 = vst [vmem:[%s1285] sm:$0xff] %v1282
    %s1287 = scalar_lea.vmem %s1, 48
    %v1288 = vld [vmem:[%s1287] sm:$0xff]
    %s1289 = sld [smem:[#allocation2 + $0x6]]
    %p1290 = scmp.ne.s32.totalorder %s1289, 0
    // Predicated region
    $region78: #{decoder_rnn2_forward.1} parent=1 // pred_check
      %p1291 = pneg %p1290
    $region79: #{decoder_rnn2_forward.1} parent=1 // pred_check_branch
      %1293 = sbr.rel (%p1291) target = $region81
    $region80: #{decoder_rnn2_forward.1} parent=1 // pred_region
      _
    $region81: #{decoder_rnn2_forward.1} parent=1 // pred_fallthru
      _
    %p1294 = pneg %p1290
    // Predicated region
    $region82: #{decoder_rnn2_forward.1} parent=1 // pred_check
      _
    $region83: #{decoder_rnn2_forward.1} parent=1 // pred_check_branch
      %1296 = sbr.rel (%p1290) target = $region85
    $region84: #{decoder_rnn2_forward.1} parent=1 // pred_region
      %1297 = vmax.xlane.f32.xlu0 %v1282
      %v1298 = vpop.xlane.xlu0 %1297
      %vm1299 = vcmp.eq.f32.partialorder %v1282, %v1298
      %v1300 = vsel %vm1299, 1, 0
      %v1301 = vcvt.s32.f32 %v1300
      %1302 = vmatprep.subr.mxu0 0.0
      %1303 = vmatpush1.msra.mxu0 %v37
      %1304 = vmatprep.subr.mxu0 0.0
      %1305 = vmatpush1.msra.mxu0 %v38
      %1306 = vmatprep.subr.mxu0 0.0
      %1307 = vmatpush1.msra.mxu0 %v39
      %1308 = vmatprep.subr.mxu0 0.0
      %1309 = vmatpush1.msra.mxu0 %v40
      %1310 = vmatprep.subr.mxu0 0.0
      %1311 = vmatpush1.msra.mxu0 %v41
      %1312 = vmatprep.subr.mxu0 0.0
      %1313 = vmatpush1.msra.mxu0 %v42
      %1314 = vmatprep.subr.mxu0 0.0
      %1315 = vmatpush1.msra.mxu0 %v43
      %1316 = vmatprep.subr.mxu0 0.0
      %1317 = vmatpush1.msra.mxu0 %v44
      %1318 = vmatprep.subr.mxu0 0.0
      %1319 = vmatpush1.msra.mxu0 %v45
      %1320 = vmatprep.subr.mxu0 0.0
      %1321 = vmatpush1.msra.mxu0 %v46
      %1322 = vmatprep.subr.mxu0 0.0
      %1323 = vmatpush1.msra.mxu0 %v47
      %1324 = vmatprep.subr.mxu0 0.0
      %1325 = vmatpush1.msra.mxu0 %v48
      %1326 = vmatprep.subr.mxu0 0.0
      %1327 = vmatpush1.msra.mxu0 %v49
      %1328 = vmatprep.subr.mxu0 0.0
      %1329 = vmatpush1.msra.mxu0 %v50
      %1330 = vmatprep.subr.mxu0 0.0
      %1331 = vmatpush1.msra.mxu0 %v51
      %1332 = vmatprep.subr.mxu0 0.0
      %1333 = vmatpush1.msra.mxu0 %v52
      %1334 = vmatprep.subr.mxu0 0.0
      %1335 = vmatpush1.msra.mxu0 0.0
      %1336 = vmatprep.subr.mxu0 0.0
      %1337 = vmatpush1.msra.mxu0 0.0
      %1338 = vmatprep.subr.mxu0 0.0
      %1339 = vmatpush1.msra.mxu0 0.0
      %1340 = vmatprep.subr.mxu0 0.0
      %1341 = vmatpush1.msra.mxu0 0.0
      %1342 = vmatprep.subr.mxu0 0.0
      %1343 = vmatpush1.msra.mxu0 0.0
      %1344 = vmatprep.subr.mxu0 0.0
      %1345 = vmatpush1.msra.mxu0 0.0
      %1346 = vmatprep.subr.mxu0 0.0
      %1347 = vmatpush1.msra.mxu0 0.0
      %1348 = vmatprep.subr.mxu0 0.0
      %1349 = vmatpush1.msra.mxu0 0.0
      %1350 = vmatprep.subr.mxu0 0.0
      %1351 = vmatpush1.msra.mxu0 0.0
      %1352 = vmatprep.subr.mxu0 0.0
      %1353 = vmatpush1.msra.mxu0 0.0
      %1354 = vmatprep.subr.mxu0 0.0
      %1355 = vmatpush1.msra.mxu0 0.0
      %1356 = vmatprep.subr.mxu0 0.0
      %1357 = vmatpush1.msra.mxu0 0.0
      %1358 = vmatprep.subr.mxu0 0.0
      %1359 = vmatpush1.msra.mxu0 0.0
      %1360 = vmatprep.subr.mxu0 0.0
      %1361 = vmatpush1.msra.mxu0 0.0
      %1362 = vmatprep.subr.mxu0 0.0
      %1363 = vmatpush1.msra.mxu0 0.0
      %1364 = vmatprep.subr.mxu0 0.0
      %1365 = vmatpush1.msra.mxu0 0.0
      %1366 = vmatprep.mubr.f32.mxu0 0.0
      %1367 = vmatmul.mubr.f32.gmra.mrb[0].mxu0 %v1301
      %v1368 = vpop.f32.mrb[0].mxu0
      %v1369 = vadd.f32 %v36, %v1368
      %v1370 = vpop.f32.mrb[0].mxu0
      %1371 = vdwg.mxu0
    $region85: #{decoder_rnn2_forward.1} parent=1 // pred_fallthru
      %v1372 = vphi %v1288, %v1369
    %v1373 = vxor.u32 %v1372, 2147483648
    %v1374 = vmul.f32 %v1373, 1.442695
    %v1375 = vpow.pop %v1374
    %v1376 = vadd.f32 %v1375, 1.0
    %v1377 = vrcp.pop %v1376
    %v1378 = vmul.f32 1.0, %v1377
    %v1379 = vtanh.pop %v1372
    %v1380 = vmul.f32 %v1378, %v1203
    %1382 = vrot.lane.b32.xlu0 %v1379, 64
    %v1383 = vpop.permute.xlu0 %1382
    %v1385 = vmul.f32 %v1378, %v1383
    %1387 = vrot.lane.b32.xlu0 %v1385, 32
    %v1388 = vpop.permute.xlu0 %1387
    %v1390 = vadd.f32 %v1380, %v1388
    %v1391 = vtanh.pop %v1390
    %1393 = vrot.lane.b32.xlu0 %v1391, 64
    %v1394 = vpop.permute.xlu0 %1393
    %v1396 = vmul.f32 %v1378, %v1394
    %1398 = vrot.lane.b32.xlu0 %v1396, 32
    %v1399 = vpop.permute.xlu0 %1398
    %v1400 = vsel %vm92, %v1399, 0
    %1402 = vmatprep.subr.mxu0 0.0
    %1403 = vmatpush1.msra.mxu0 %v53
    %1404 = vmatprep.subr.mxu0 0.0
    %1405 = vmatpush1.msra.mxu0 %v54
    %1406 = vmatprep.subr.mxu0 0.0
    %1407 = vmatpush1.msra.mxu0 %v55
    %1408 = vmatprep.subr.mxu0 0.0
    %1409 = vmatpush1.msra.mxu0 %v56
    %1410 = vmatprep.subr.mxu0 0.0
    %1411 = vmatpush1.msra.mxu0 0.0
    %1412 = vmatprep.subr.mxu0 0.0
    %1413 = vmatpush1.msra.mxu0 0.0
    %1414 = vmatprep.subr.mxu0 0.0
    %1415 = vmatpush1.msra.mxu0 0.0
    %1416 = vmatprep.subr.mxu0 0.0
    %1417 = vmatpush1.msra.mxu0 0.0
    %1418 = vmatprep.subr.mxu0 0.0
    %1419 = vmatpush1.msra.mxu0 0.0
    %1420 = vmatprep.subr.mxu0 0.0
    %1421 = vmatpush1.msra.mxu0 0.0
    %1422 = vmatprep.subr.mxu0 0.0
    %1423 = vmatpush1.msra.mxu0 0.0
    %1424 = vmatprep.subr.mxu0 0.0
    %1425 = vmatpush1.msra.mxu0 0.0
    %1426 = vmatprep.subr.mxu0 0.0
    %1427 = vmatpush1.msra.mxu0 0.0
    %1428 = vmatprep.subr.mxu0 0.0
    %1429 = vmatpush1.msra.mxu0 0.0
    %1430 = vmatprep.subr.mxu0 0.0
    %1431 = vmatpush1.msra.mxu0 0.0
    %1432 = vmatprep.subr.mxu0 0.0
    %1433 = vmatpush1.msra.mxu0 0.0
    %1434 = vmatprep.subr.mxu0 0.0
    %1435 = vmatpush1.msra.mxu0 0.0
    %1436 = vmatprep.subr.mxu0 0.0
    %1437 = vmatpush1.msra.mxu0 0.0
    %1438 = vmatprep.subr.mxu0 0.0
    %1439 = vmatpush1.msra.mxu0 0.0
    %1440 = vmatprep.subr.mxu0 0.0
    %1441 = vmatpush1.msra.mxu0 0.0
    %1442 = vmatprep.subr.mxu0 0.0
    %1443 = vmatpush1.msra.mxu0 0.0
    %1444 = vmatprep.subr.mxu0 0.0
    %1445 = vmatpush1.msra.mxu0 0.0
    %1446 = vmatprep.subr.mxu0 0.0
    %1447 = vmatpush1.msra.mxu0 0.0
    %1448 = vmatprep.subr.mxu0 0.0
    %1449 = vmatpush1.msra.mxu0 0.0
    %1450 = vmatprep.subr.mxu0 0.0
    %1451 = vmatpush1.msra.mxu0 0.0
    %1452 = vmatprep.subr.mxu0 0.0
    %1453 = vmatpush1.msra.mxu0 0.0
    %1454 = vmatprep.subr.mxu0 0.0
    %1455 = vmatpush1.msra.mxu0 0.0
    %1456 = vmatprep.subr.mxu0 0.0
    %1457 = vmatpush1.msra.mxu0 0.0
    %1458 = vmatprep.subr.mxu0 0.0
    %1459 = vmatpush1.msra.mxu0 0.0
    %1460 = vmatprep.subr.mxu0 0.0
    %1461 = vmatpush1.msra.mxu0 0.0
    %1462 = vmatprep.subr.mxu0 0.0
    %1463 = vmatpush1.msra.mxu0 0.0
    %1464 = vmatprep.subr.mxu0 0.0
    %1465 = vmatpush1.msra.mxu0 0.0
    %1466 = vmatprep.mubr.f32.mxu0 0.0
    %1467 = vmatmul.mubr.f32.gmra.mrb[0].mxu0 %v1400
    %v1468 = vpop.f32.mrb[0].mxu0
    %v1469 = vadd.f32 %v62, %v1468
    %v1470 = vpop.f32.mrb[0].mxu0
    %1471 = vdwg.mxu0
    %s1472 = scalar_lea.vmem %s6, 56
    %1473 = vst [vmem:[%s1472] sm:$0xff] %v1469
    // Predicated region
    $region86: #{decoder_rnn2_forward.1} parent=1 // pred_check
      _
    $region87: #{decoder_rnn2_forward.1} parent=1 // pred_check_branch
      %1475 = sbr.rel (0) target = $region89
    $region88: #{decoder_rnn2_forward.1} parent=1 // pred_region
      _
    $region89: #{decoder_rnn2_forward.1} parent=1 // pred_fallthru
      _
    // Predicated region
    $region90: #{decoder_rnn2_forward.1} parent=1 // pred_check
      _
    $region91: #{decoder_rnn2_forward.1} parent=1 // pred_check_branch
      %1477 = sbr.rel (0) target = $region93
    $region92: #{decoder_rnn2_forward.1} parent=1 // pred_region
      _
    $region93: #{decoder_rnn2_forward.1} parent=1 // pred_fallthru
      _
    %1478 = vsyncpa [#allocation3], 1

</llo_original>
